<compile_context>
chip_gen: v7x
topology: tpu7x:2x2x1
jax: 0.10.0
libtpu: 0.0.40
codegen_flags: <defaults>
</compile_context>

<pallas_src>
import functools

import jax
import jax.numpy as jnp
from jax.experimental import pallas as pl
from jax.experimental.pallas import tpu as pltpu


# ---------------------------------------------------------------------------
# Fused kernel: point MLP -> per-cloud mean -> batched classification head
# ---------------------------------------------------------------------------
def fused_net_kernel(x_ref, w1_ref, b1_ref, w2_ref, b2_ref,
                     nn1w_ref, nn1b_ref, nn2w_ref, nn2b_ref,
                     o_ref, *, clouds_per_block, points):
    # ---- per-point MLP over all points of this cloud group -------------------
    # x: (CB*P, 48) bf16; MXU matmuls in bf16 with f32 accumulation,
    # elementwise math in f32.
    x = x_ref[...]
    h = jnp.dot(x, w1_ref[...], preferred_element_type=jnp.float32) + b1_ref[...]
    h = jnp.maximum(h, 0.0)                                            # ReLU
    h = jnp.dot(h.astype(jnp.bfloat16), w2_ref[...],
                preferred_element_type=jnp.float32) + b2_ref[...]
    h = jnp.maximum(h, 0.0)                                            # ReLU
    feats = 1.0 / (1.0 + jnp.exp(-h))                                  # exact sigmoid (f32)

    # ---- per-cloud mean over points (f32) -------------------------------------
    ys = jnp.mean(
        feats.reshape(clouds_per_block, points, feats.shape[-1]), axis=1
    )                                                                  # (CB, 64)

    # ---- batched head: nn1 -> ELU -> nn2 -> LogSoftmax ------------------------
    y1 = jnp.dot(ys.astype(jnp.bfloat16), nn1w_ref[...],
                 preferred_element_type=jnp.float32) + nn1b_ref[...]
    # ELU(alpha=1); clamp exp argument so the untaken branch stays finite.
    y1 = jnp.where(y1 > 0.0, y1, jnp.exp(jnp.minimum(y1, 0.0)) - 1.0)
    y2 = jnp.dot(y1.astype(jnp.bfloat16), nn2w_ref[...],
                 preferred_element_type=jnp.float32) + nn2b_ref[...]   # (CB, 128)
    m = jnp.max(y2, axis=-1, keepdims=True)                            # LogSoftmax
    s = y2 - m
    lse = jnp.log(jnp.sum(jnp.exp(s), axis=-1, keepdims=True))
    o_ref[...] = s - lse                                               # lane-dense store


def _pick_clouds_per_block(batch, points, max_rows=16384):
    """Largest divisor CB of `batch` with CB*points <= max_rows, preferring >=2
    grid steps (keeps a shardable parallel axis for v7x megacore)."""
    divisors = [d for d in range(1, batch + 1) if batch % d == 0]
    fitting = [d for d in divisors if d * points <= max_rows] or [1]
    multi_step = [d for d in fitting if batch // d >= 2]
    return max(multi_step) if multi_step else max(fitting)


# ---------------------------------------------------------------------------
# Wrapper
# ---------------------------------------------------------------------------
def net_forward(x, params, batch_size, *, clouds_per_block=None):
    """x: (N, in_size) per-point features (stand-in for directional features).

    Returns (batch_size, n_classes) log-probabilities.
    """
    n_rows, in_size = x.shape
    points = n_rows // batch_size
    assert points * batch_size == n_rows
    assert points % 8 == 0, "points per cloud must be a multiple of 8"

    cb = clouds_per_block or _pick_clouds_per_block(batch_size, points)
    assert batch_size % cb == 0
    groups = batch_size // cb

    head_hidden = params["nn1_w"].shape[1]
    n_classes = params["nn2_w"].shape[1]
    padded_classes = ((n_classes + 127) // 128) * 128

    # bf16 MXU operands (f32 accumulation in-kernel); biases stay f32.
    xb = x.astype(jnp.bfloat16).reshape(groups, cb * points, in_size)
    w1 = params["dd_w1"].astype(jnp.bfloat16)
    w2 = params["dd_w2"].astype(jnp.bfloat16)
    nn1w = params["nn1_w"].astype(jnp.bfloat16)
    b1 = params["dd_b1"].astype(jnp.float32)
    b2 = params["dd_b2"].astype(jnp.float32)
    nn1b = params["nn1_b"].astype(jnp.float32)
    # Pad the class dim to a lane-dense multiple of 128; padded logits get a
    # huge negative bias so they contribute nothing to the log-softmax.
    nn2w = jnp.zeros((head_hidden, padded_classes), jnp.bfloat16)
    nn2w = nn2w.at[:, :n_classes].set(params["nn2_w"].astype(jnp.bfloat16))
    nn2b = jnp.full((1, padded_classes), -1e9, jnp.float32)
    nn2b = nn2b.at[:, :n_classes].set(params["nn2_b"].astype(jnp.float32))

    kernel = functools.partial(fused_net_kernel,
                               clouds_per_block=cb, points=points)
    whole = lambda shape: pl.BlockSpec(shape, lambda g: (0, 0))  # resident weights

    out = pl.pallas_call(
        kernel,
        out_shape=jax.ShapeDtypeStruct((groups, cb, padded_classes), jnp.float32),
        grid=(groups,),
        in_specs=[
            # x block: all points of one cloud group (leading group dim squeezed)
            pl.BlockSpec((None, cb * points, in_size), lambda g: (g, 0, 0)),
            whole(w1.shape), whole(b1.shape),
            whole(w2.shape), whole(b2.shape),
            whole(nn1w.shape), whole(nn1b.shape),
            whole(nn2w.shape), whole(nn2b.shape),
        ],
        out_specs=pl.BlockSpec((None, cb, padded_classes), lambda g: (g, 0, 0)),
        compiler_params=pltpu.CompilerParams(
            dimension_semantics=("parallel",),
            vmem_limit_bytes=64 * 1024 * 1024,
        ),
    )(xb, w1, b1, w2, b2, nn1w, nn1b, nn2w, nn2b)

    return out.reshape(batch_size, padded_classes)[:, :n_classes]


# ---------------------------------------------------------------------------
# Pure-JAX reference (for correctness check)
# ---------------------------------------------------------------------------
def reference_forward(x, params, batch_size, *, matmul_dtype=jnp.float32):
    c = lambda a: a.astype(matmul_dtype)
    h = jnp.dot(c(x), c(params["dd_w1"]),
                preferred_element_type=jnp.float32) + params["dd_b1"]
    h = jnp.maximum(h, 0.0)
    h = jnp.dot(c(h), c(params["dd_w2"]),
                preferred_element_type=jnp.float32) + params["dd_b2"]
    h = jnp.maximum(h, 0.0)
    f = jax.nn.sigmoid(h)
    ys = f.reshape(batch_size, -1, f.shape[-1]).mean(axis=1)
    y1 = jnp.dot(c(ys), c(params["nn1_w"]),
                 preferred_element_type=jnp.float32) + params["nn1_b"]
    y1 = jax.nn.elu(y1)
    y2 = jnp.dot(c(y1), c(params["nn2_w"]),
                 preferred_element_type=jnp.float32) + params["nn2_b"]
    return jax.nn.log_softmax(y2, axis=-1)


# ---------------------------------------------------------------------------
# Main
# ---------------------------------------------------------------------------
if __name__ == "__main__":
    # Module-implied sizes (points scaled down): filter_nr=8 -> in_size = 8*3*2
    # = 48, out_size = 64, nn1: 64->512, nn2: 512->40 classes.
    B = 4            # small batch (module default 20)
    P = 256          # points per cloud (module default 1024)
    IN_SIZE = 48
    HIDDEN_DD = 128
    OUT_SIZE = 64
    HIDDEN_HEAD = 512
    N_CLASSES = 40
    N = B * P

    key = jax.random.PRNGKey(0)
    ks = jax.random.split(key, 9)

    def init(k, shape, scale=0.1):
        return (scale * jax.random.normal(k, shape)).astype(jnp.float32)

    params = {
        # DirectionalDense MLP (Linear(48,128), ReLU, Linear(128,64), ReLU)
        "dd_w1": init(ks[0], (IN_SIZE, HIDDEN_DD)),
        "dd_b1": init(ks[1], (1, HIDDEN_DD)),
        "dd_w2": init(ks[2], (HIDDEN_DD, OUT_SIZE)),
        "dd_b2": init(ks[3], (1, OUT_SIZE)),
        # Head: nn1 (64->512), nn2 (512->40)
        "nn1_w": init(ks[4], (OUT_SIZE, HIDDEN_HEAD)),
        "nn1_b": init(ks[5], (1, HIDDEN_HEAD)),
        "nn2_w": init(ks[6], (HIDDEN_HEAD, N_CLASSES)),
        "nn2_b": init(ks[7], (1, N_CLASSES)),
    }

    # Stand-in for the (untranslatable) directional feature extraction output.
    x = init(ks[8], (N, IN_SIZE), scale=1.0)

    # Default picker -> clouds_per_block=2, grid=(2,): exercises multi-step
    # parallel grid and the per-cloud pooling path.
    out = jax.block_until_ready(net_forward(x, params, B))

    assert out.shape == (B, N_CLASSES), out.shape
    # log-softmax rows must sum to ~1 in prob space
    assert jnp.allclose(jnp.sum(jnp.exp(out), axis=1), 1.0, atol=1e-3)
    # tight match against a reference using the same bf16 matmul-operand casts
    ref_bf16 = reference_forward(x, params, B, matmul_dtype=jnp.bfloat16)
    assert jnp.allclose(out, ref_bf16, atol=2e-3, rtol=2e-3), \
        float(jnp.max(jnp.abs(out - ref_bf16)))
    # loose match against the full-f32 module semantics (bf16 MXU deviation)
    ref_f32 = reference_forward(x, params, B)
    assert jnp.allclose(out, ref_f32, atol=6e-2, rtol=6e-2), \
        float(jnp.max(jnp.abs(out - ref_f32)))
    print("KERNEL_OK")
</pallas_src>

<mosaic_0001>
module attributes {stable_mosaic.version = 11 : i64} {
  func.func @fused_net_kernel(%arg0: i32, %arg1: memref<1x512x48xbf16, #tpu.memory_space<vmem>>, %arg2: memref<48x128xbf16, #tpu.memory_space<vmem>>, %arg3: memref<1x128xf32, #tpu.memory_space<vmem>>, %arg4: memref<128x64xbf16, #tpu.memory_space<vmem>>, %arg5: memref<1x64xf32, #tpu.memory_space<vmem>>, %arg6: memref<64x512xbf16, #tpu.memory_space<vmem>>, %arg7: memref<1x512xf32, #tpu.memory_space<vmem>>, %arg8: memref<512x128xbf16, #tpu.memory_space<vmem>>, %arg9: memref<1x128xf32, #tpu.memory_space<vmem>>, %arg10: memref<1x2x128xf32, #tpu.memory_space<vmem>>) attributes {dimension_semantics = [#tpu.dimension_semantics<parallel>], iteration_bounds = array<i64: 2>, scalar_prefetch = 0 : i64, scratch_operands = 0 : i64, tpu.core_type = #tpu.core_type<tc>, window_params = [{transform_indices = @transform_0, window_bounds = array<i64: 1, 512, 48>}, {pipeline_mode = #tpu.pipeline_mode<synchronous>, transform_indices = @transform_1, window_bounds = array<i64: 48, 128>}, {pipeline_mode = #tpu.pipeline_mode<synchronous>, transform_indices = @transform_2, window_bounds = array<i64: 1, 128>}, {pipeline_mode = #tpu.pipeline_mode<synchronous>, transform_indices = @transform_3, window_bounds = array<i64: 128, 64>}, {pipeline_mode = #tpu.pipeline_mode<synchronous>, transform_indices = @transform_4, window_bounds = array<i64: 1, 64>}, {pipeline_mode = #tpu.pipeline_mode<synchronous>, transform_indices = @transform_5, window_bounds = array<i64: 64, 512>}, {pipeline_mode = #tpu.pipeline_mode<synchronous>, transform_indices = @transform_6, window_bounds = array<i64: 1, 512>}, {pipeline_mode = #tpu.pipeline_mode<synchronous>, transform_indices = @transform_7, window_bounds = array<i64: 512, 128>}, {pipeline_mode = #tpu.pipeline_mode<synchronous>, transform_indices = @transform_8, window_bounds = array<i64: 1, 128>}, {transform_indices = @transform_9, window_bounds = array<i64: 1, 2, 128>}]} {
    %c0 = arith.constant 0 : index
    %c0_0 = arith.constant 0 : index
    %c0_1 = arith.constant 0 : index
    %0 = vector.load %arg1[%c0, %c0_0, %c0_1] : memref<1x512x48xbf16, #tpu.memory_space<vmem>>, vector<1x512x48xbf16>
    %1 = vector.shape_cast %0 : vector<1x512x48xbf16> to vector<512x48xbf16>
    %c0_2 = arith.constant 0 : index
    %c0_3 = arith.constant 0 : index
    %2 = vector.load %arg2[%c0_2, %c0_3] : memref<48x128xbf16, #tpu.memory_space<vmem>>, vector<48x128xbf16>
    %cst = arith.constant dense<0.000000e+00> : vector<512x128xf32>
    %3 = tpu.matmul %1, %2, %cst {dimension_numbers = #tpu.dot_dimension_numbers<[1], [0], [0], [1], [0, 0, 1, 1], [], []>} : vector<512x48xbf16>, vector<48x128xbf16>, vector<512x128xf32> -> vector<512x128xf32>
    %c0_4 = arith.constant 0 : index
    %c0_5 = arith.constant 0 : index
    %4 = vector.load %arg3[%c0_4, %c0_5] : memref<1x128xf32, #tpu.memory_space<vmem>>, vector<1x128xf32>
    %5 = vector.broadcast %4 : vector<1x128xf32> to vector<512x128xf32>
    %6 = arith.addf %3, %5 : vector<512x128xf32>
    %cst_6 = arith.constant 0.000000e+00 : f32
    %7 = vector.broadcast %cst_6 : f32 to vector<512x128xf32>
    %8 = arith.maximumf %6, %7 : vector<512x128xf32>
    %9 = arith.truncf %8 : vector<512x128xf32> to vector<512x128xbf16>
    %c0_7 = arith.constant 0 : index
    %c0_8 = arith.constant 0 : index
    %10 = vector.load %arg4[%c0_7, %c0_8] : memref<128x64xbf16, #tpu.memory_space<vmem>>, vector<128x64xbf16>
    %cst_9 = arith.constant dense<0.000000e+00> : vector<512x64xf32>
    %11 = tpu.matmul %9, %10, %cst_9 {dimension_numbers = #tpu.dot_dimension_numbers<[1], [0], [0], [1], [0, 0, 1, 1], [], []>} : vector<512x128xbf16>, vector<128x64xbf16>, vector<512x64xf32> -> vector<512x64xf32>
    %c0_10 = arith.constant 0 : index
    %c0_11 = arith.constant 0 : index
    %12 = vector.load %arg5[%c0_10, %c0_11] : memref<1x64xf32, #tpu.memory_space<vmem>>, vector<1x64xf32>
    %13 = vector.broadcast %12 : vector<1x64xf32> to vector<512x64xf32>
    %14 = arith.addf %11, %13 : vector<512x64xf32>
    %cst_12 = arith.constant 0.000000e+00 : f32
    %15 = vector.broadcast %cst_12 : f32 to vector<512x64xf32>
    %16 = arith.maximumf %14, %15 : vector<512x64xf32>
    %cst_13 = arith.constant 0.000000e+00 : f32
    %17 = vector.broadcast %cst_13 : f32 to vector<512x64xf32>
    %18 = arith.subf %17, %16 : vector<512x64xf32>
    %19 = math.exp %18 : vector<512x64xf32>
    %cst_14 = arith.constant 1.000000e+00 : f32
    %20 = vector.broadcast %cst_14 : f32 to vector<512x64xf32>
    %21 = arith.addf %20, %19 : vector<512x64xf32>
    %cst_15 = arith.constant 1.000000e+00 : f32
    %22 = vector.broadcast %cst_15 : f32 to vector<512x64xf32>
    %23 = arith.divf %22, %21 : vector<512x64xf32>
    %24 = vector.shape_cast %23 : vector<512x64xf32> to vector<2x256x64xf32>
    %cst_16 = arith.constant dense<0.000000e+00> : vector<2x64xf32>
    %25 = vector.multi_reduction <add>, %24, %cst_16 [1] : vector<2x256x64xf32> to vector<2x64xf32>
    %cst_17 = arith.constant 2.560000e+02 : f32
    %26 = vector.broadcast %cst_17 : f32 to vector<2x64xf32>
    %27 = arith.divf %25, %26 : vector<2x64xf32>
    %28 = arith.truncf %27 : vector<2x64xf32> to vector<2x64xbf16>
    %c0_18 = arith.constant 0 : index
    %c0_19 = arith.constant 0 : index
    %29 = vector.load %arg6[%c0_18, %c0_19] : memref<64x512xbf16, #tpu.memory_space<vmem>>, vector<64x512xbf16>
    %cst_20 = arith.constant dense<0.000000e+00> : vector<2x512xf32>
    %30 = tpu.matmul %28, %29, %cst_20 {dimension_numbers = #tpu.dot_dimension_numbers<[1], [0], [0], [1], [0, 0, 1, 1], [], []>} : vector<2x64xbf16>, vector<64x512xbf16>, vector<2x512xf32> -> vector<2x512xf32>
    %c0_21 = arith.constant 0 : index
    %c0_22 = arith.constant 0 : index
    %31 = vector.load %arg7[%c0_21, %c0_22] : memref<1x512xf32, #tpu.memory_space<vmem>>, vector<1x512xf32>
    %32 = vector.broadcast %31 : vector<1x512xf32> to vector<2x512xf32>
    %33 = arith.addf %30, %32 : vector<2x512xf32>
    %cst_23 = arith.constant 0.000000e+00 : f32
    %34 = vector.broadcast %cst_23 : f32 to vector<2x512xf32>
    %35 = arith.cmpf ogt, %33, %34 : vector<2x512xf32>
    %cst_24 = arith.constant 0.000000e+00 : f32
    %36 = vector.broadcast %cst_24 : f32 to vector<2x512xf32>
    %37 = arith.minimumf %33, %36 : vector<2x512xf32>
    %38 = math.exp %37 : vector<2x512xf32>
    %cst_25 = arith.constant 1.000000e+00 : f32
    %39 = vector.broadcast %cst_25 : f32 to vector<2x512xf32>
    %40 = arith.subf %38, %39 : vector<2x512xf32>
    %41 = arith.select %35, %33, %40 : vector<2x512xi1>, vector<2x512xf32>
    %42 = arith.truncf %41 : vector<2x512xf32> to vector<2x512xbf16>
    %c0_26 = arith.constant 0 : index
    %c0_27 = arith.constant 0 : index
    %43 = vector.load %arg8[%c0_26, %c0_27] : memref<512x128xbf16, #tpu.memory_space<vmem>>, vector<512x128xbf16>
    %cst_28 = arith.constant dense<0.000000e+00> : vector<2x128xf32>
    %44 = tpu.matmul %42, %43, %cst_28 {dimension_numbers = #tpu.dot_dimension_numbers<[1], [0], [0], [1], [0, 0, 1, 1], [], []>} : vector<2x512xbf16>, vector<512x128xbf16>, vector<2x128xf32> -> vector<2x128xf32>
    %c0_29 = arith.constant 0 : index
    %c0_30 = arith.constant 0 : index
    %45 = vector.load %arg9[%c0_29, %c0_30] : memref<1x128xf32, #tpu.memory_space<vmem>>, vector<1x128xf32>
    %46 = vector.broadcast %45 : vector<1x128xf32> to vector<2x128xf32>
    %47 = arith.addf %44, %46 : vector<2x128xf32>
    %cst_31 = arith.constant dense<0xFF800000> : vector<2xf32>
    %48 = vector.multi_reduction <maximumf>, %47, %cst_31 [1] : vector<2x128xf32> to vector<2xf32>
    %49 = vector.shape_cast %48 : vector<2xf32> to vector<2x1xf32>
    %50 = vector.broadcast %49 : vector<2x1xf32> to vector<2x128xf32>
    %51 = arith.subf %47, %50 : vector<2x128xf32>
    %52 = math.exp %51 : vector<2x128xf32>
    %cst_32 = arith.constant dense<0.000000e+00> : vector<2xf32>
    %53 = vector.multi_reduction <add>, %52, %cst_32 [1] : vector<2x128xf32> to vector<2xf32>
    %54 = vector.shape_cast %53 : vector<2xf32> to vector<2x1xf32>
    %55 = math.log %54 : vector<2x1xf32>
    %56 = vector.broadcast %55 : vector<2x1xf32> to vector<2x128xf32>
    %57 = arith.subf %51, %56 : vector<2x128xf32>
    %c0_33 = arith.constant 0 : index
    %c0_34 = arith.constant 0 : index
    %c0_35 = arith.constant 0 : index
    %58 = vector.load %arg10[%c0_33, %c0_34, %c0_35] : memref<1x2x128xf32, #tpu.memory_space<vmem>>, vector<1x2x128xf32>
    %59 = vector.shape_cast %58 : vector<1x2x128xf32> to vector<2x128xf32>
    %60 = vector.shape_cast %57 : vector<2x128xf32> to vector<1x2x128xf32>
    tpu.vector_store %arg10[%c0_33, %c0_34, %c0_35], %60 {strides = array<i32>} : memref<1x2x128xf32, #tpu.memory_space<vmem>>, vector<1x2x128xf32>,
    return
  }
  func.func @transform_0(%arg0: i32) -> (i32, i32, i32) {
    %c0_i32 = arith.constant 0 : i32
    %c0_i32_0 = arith.constant 0 : i32
    %c0_i32_1 = arith.constant 0 : i32
    return %arg0, %c0_i32, %c0_i32_0 : i32, i32, i32
  }
  func.func @transform_1(%arg0: i32) -> (i32, i32) {
    %c0_i32 = arith.constant 0 : i32
    %c0_i32_0 = arith.constant 0 : i32
    %c0_i32_1 = arith.constant 0 : i32
    return %c0_i32, %c0_i32_0 : i32, i32
  }
  func.func @transform_2(%arg0: i32) -> (i32, i32) {
    %c0_i32 = arith.constant 0 : i32
    %c0_i32_0 = arith.constant 0 : i32
    %c0_i32_1 = arith.constant 0 : i32
    return %c0_i32, %c0_i32_0 : i32, i32
  }
  func.func @transform_3(%arg0: i32) -> (i32, i32) {
    %c0_i32 = arith.constant 0 : i32
    %c0_i32_0 = arith.constant 0 : i32
    %c0_i32_1 = arith.constant 0 : i32
    return %c0_i32, %c0_i32_0 : i32, i32
  }
  func.func @transform_4(%arg0: i32) -> (i32, i32) {
    %c0_i32 = arith.constant 0 : i32
    %c0_i32_0 = arith.constant 0 : i32
    %c0_i32_1 = arith.constant 0 : i32
    return %c0_i32, %c0_i32_0 : i32, i32
  }
  func.func @transform_5(%arg0: i32) -> (i32, i32) {
    %c0_i32 = arith.constant 0 : i32
    %c0_i32_0 = arith.constant 0 : i32
    %c0_i32_1 = arith.constant 0 : i32
    return %c0_i32, %c0_i32_0 : i32, i32
  }
  func.func @transform_6(%arg0: i32) -> (i32, i32) {
    %c0_i32 = arith.constant 0 : i32
    %c0_i32_0 = arith.constant 0 : i32
    %c0_i32_1 = arith.constant 0 : i32
    return %c0_i32, %c0_i32_0 : i32, i32
  }
  func.func @transform_7(%arg0: i32) -> (i32, i32) {
    %c0_i32 = arith.constant 0 : i32
    %c0_i32_0 = arith.constant 0 : i32
    %c0_i32_1 = arith.constant 0 : i32
    return %c0_i32, %c0_i32_0 : i32, i32
  }
  func.func @transform_8(%arg0: i32) -> (i32, i32) {
    %c0_i32 = arith.constant 0 : i32
    %c0_i32_0 = arith.constant 0 : i32
    %c0_i32_1 = arith.constant 0 : i32
    return %c0_i32, %c0_i32_0 : i32, i32
  }
  func.func @transform_9(%arg0: i32) -> (i32, i32, i32) {
    %c0_i32 = arith.constant 0 : i32
    %c0_i32_0 = arith.constant 0 : i32
    %c0_i32_1 = arith.constant 0 : i32
    return %arg0, %c0_i32, %c0_i32_0 : i32, i32, i32
  }
}

</mosaic_0001>

<llo_original>
// kernel: tpu_custom_call.1
$region0: #{tpu_custom_call.1}
  #allocation0 [shape = 'u32[]', space=smem, size = 0x4, offset = 0x4, fixed_abs, tag = 'smem constant byte address 0x4 - core index']
  #allocation1 [shape = 'u32[144,128]{1,0:T(1,128)}', space=vmem, size = 0x12000, scoped, tag = 'internal scratch']
  %s0 = inlined_call_operand.hbm [shape: bf16[2,512,48], index: 0, kind: input, shape index: {}]
  %s1 = inlined_call_operand.hbm [shape: bf16[48,128], index: 1, kind: input, shape index: {}]
  %s2 = inlined_call_operand.hbm [shape: f32[1,128], index: 2, kind: input, shape index: {}]
  %s3 = inlined_call_operand.hbm [shape: bf16[128,64], index: 3, kind: input, shape index: {}]
  %s4 = inlined_call_operand.hbm [shape: f32[1,64], index: 4, kind: input, shape index: {}]
  %s5 = inlined_call_operand.hbm [shape: bf16[64,512], index: 5, kind: input, shape index: {}]
  %s6 = inlined_call_operand.hbm [shape: f32[1,512], index: 6, kind: input, shape index: {}]
  %s7 = inlined_call_operand.hbm [shape: bf16[512,128], index: 7, kind: input, shape index: {}]
  %s8 = inlined_call_operand.hbm [shape: f32[1,128], index: 8, kind: input, shape index: {}]
  %s9 = inlined_call_operand.hbm [shape: f32[2,2,128], index: 9, kind: output, shape index: {}]
  %s10 = sld [smem:[#allocation0]]
  $region105: #{tpu_custom_call.1} parent=0
    _
  %s12 = ssub.s32 1, %s10
  %s13 = scalar_select 0, %s12, %s10
  $region1: #{tpu_custom_call.1} parent=0
    #allocation2 [shape = 'u8[262144]{0}', space=vmem, size = 0x40000, scoped, tag = 'input window, operand 0']
    #allocation3 [shape = 's32[2]{0}', space=sflag, size = 0x8, scoped, tag = 'scoped memory for tpu_custom_call.1']
    #allocation4 [shape = 's32[2]{0}', space=sflag, size = 0x8, scoped, tag = 'scoped memory for tpu_custom_call.1']
    #allocation5 [shape = 'u8[12288]{0}', space=vmem, size = 0x3000, scoped, tag = 'input window, operand 1, single buffered']
    #allocation6 [shape = 's32[1]{0}', space=sflag, size = 0x4, scoped, tag = 'scoped memory for tpu_custom_call.1']
    #allocation7 [shape = 'u8[512]{0}', space=vmem, size = 0x400, scoped, tag = 'input window, operand 2, single buffered']
    #allocation8 [shape = 'u8[32768]{0}', space=vmem, size = 0x8000, scoped, tag = 'input window, operand 3, single buffered']
    #allocation9 [shape = 's32[1]{0}', space=sflag, size = 0x4, scoped, tag = 'scoped memory for tpu_custom_call.1']
    #allocation10 [shape = 'u8[512]{0}', space=vmem, size = 0x400, scoped, tag = 'input window, operand 4, single buffered']
    #allocation11 [shape = 'u8[65536]{0}', space=vmem, size = 0x10000, scoped, tag = 'input window, operand 5, single buffered']
    #allocation12 [shape = 's32[1]{0}', space=sflag, size = 0x4, scoped, tag = 'scoped memory for tpu_custom_call.1']
    #allocation13 [shape = 'u8[2048]{0}', space=vmem, size = 0x800, scoped, tag = 'input window, operand 6, single buffered']
    #allocation14 [shape = 'u8[131072]{0}', space=vmem, size = 0x20000, scoped, tag = 'input window, operand 7, single buffered']
    #allocation15 [shape = 's32[1]{0}', space=sflag, size = 0x4, scoped, tag = 'scoped memory for tpu_custom_call.1']
    #allocation16 [shape = 'u8[512]{0}', space=vmem, size = 0x400, scoped, tag = 'input window, operand 8, single buffered']
    #allocation17 [shape = 'u8[2048]{0}', space=vmem, size = 0x800, scoped, tag = 'output window, operand 0']
    %14 = vsyncpa [#allocation3], 0
    %s15 = scalar_lea.sflag [#allocation3], 1
    %16 = vsyncpa %s15, 0
    %17 = vsyncpa [#allocation6], 0
    %18 = vsyncpa [#allocation9], 0
    %19 = vsyncpa [#allocation12], 0
    %20 = vsyncpa [#allocation15], 0
    %21 = vsyncpa [#allocation4], 0
    %s22 = scalar_lea.sflag [#allocation4], 1
    %23 = vsyncpa %s22, 0
    loop: start=0, step=1, limit=4
    $region2: #{tpu_custom_call.1} parent=1 // loop_pre_header
      _
    $region3: #{tpu_custom_call.1} parent=1 // loop_header
      %s25 = sphi 0, %s29
      %p26 = scmp.ge.s32.totalorder %s25, 4
      %s35 = sphi 0, %s37
      %s38 = sphi 0, %s35
      %s39 = sphi 0, %s38
      %s55 = sphi 0, %s39
      %s59 = sphi 0, %s59
      %s61 = sphi 0, %s59
      %s62 = sphi 0, %s61
      %s76 = sphi 0, %s62
      %s80 = sphi 0, %s80
      %s82 = sphi 0, %s80
      %s83 = sphi 0, %s82
      %s97 = sphi 0, %s83
      %s101 = sphi 0, %s101
      %s103 = sphi 0, %s101
      %s104 = sphi 0, %s103
      %s118 = sphi 0, %s104
      %s122 = sphi 0, %s122
      %s124 = sphi 0, %s122
      %s125 = sphi 0, %s124
      %s139 = sphi 0, %s125
      %s143 = sphi 0, %s143
      %s145 = sphi 0, %s143
      %s146 = sphi 0, %s145
      %s160 = sphi 0, %s146
      %s164 = sphi 0, %s164
      %s166 = sphi 0, %s164
      %s167 = sphi 0, %s166
      %s181 = sphi 0, %s167
      %s185 = sphi 0, %s185
      %s187 = sphi 0, %s185
      %s188 = sphi 0, %s187
      %s202 = sphi 0, %s188
      %s206 = sphi 0, %s206
      %s208 = sphi 0, %s206
      %s209 = sphi 0, %s208
      %s223 = sphi 0, %s209
      %s229 = sphi 0, %s231
      %s232 = sphi 0, %s229
      %s233 = sphi 0, %s232
      %s249 = sphi 0, %s233
    $region4: #{tpu_custom_call.1} parent=1 // loop_header_branch
      %28 = sbr.rel (%p26) target = $region8
    $region5: #{tpu_custom_call.1} parent=1 // loop_body
      %s30 = ssub.s32 %s25, 1
      %s31 = ssub.s32 %s25, 2
      %s32 = sadd.s32 %s25, 1
      %s33 = ssub.s32 %s25, %s32
      %p34 = scmp.eq.s32.totalorder %s33, 0
      %s36 = sadd.s32 %s35, 1
      %s37 = scalar_select %p34, %s35, %s36
      %p40 = pneg %p34
      %p41 = scmp.eq.s32.totalorder %s25, 1
      %p42 = por %p40, %p41
      %p43 = scmp.ne.s32.totalorder %s35, %s38
      %p44 = scmp.eq.s32.totalorder %s25, 0
      %p45 = por %p43, %p44
      %p46 = scmp.ne.s32.totalorder %s35, %s38
      %p47 = scmp.eq.s32.totalorder %s30, 1
      %p48 = por %p46, %p47
      %p49 = scmp.ne.s32.totalorder %s38, %s39
      %p50 = scmp.eq.s32.totalorder %s30, 0
      %p51 = por %p49, %p50
      %p52 = scmp.ne.s32.totalorder %s38, %s39
      %p53 = scmp.eq.s32.totalorder %s31, 1
      %p54 = por %p52, %p53
      %p56 = scmp.ne.s32.totalorder %s39, %s55
      %p57 = scmp.eq.s32.totalorder %s31, 0
      %p58 = por %p56, %p57
      %s60 = sadd.s32 %s59, 1
      %p63 = scmp.eq.s32.totalorder %s25, 1
      %p64 = scmp.ne.s32.totalorder %s59, %s61
      %p65 = scmp.eq.s32.totalorder %s25, 0
      %p66 = por %p64, %p65
      %p67 = scmp.ne.s32.totalorder %s59, %s61
      %p68 = scmp.eq.s32.totalorder %s30, 1
      %p69 = por %p67, %p68
      %p70 = scmp.ne.s32.totalorder %s61, %s62
      %p71 = scmp.eq.s32.totalorder %s30, 0
      %p72 = por %p70, %p71
      %p73 = scmp.ne.s32.totalorder %s61, %s62
      %p74 = scmp.eq.s32.totalorder %s31, 1
      %p75 = por %p73, %p74
      %p77 = scmp.ne.s32.totalorder %s62, %s76
      %p78 = scmp.eq.s32.totalorder %s31, 0
      %p79 = por %p77, %p78
      %s81 = sadd.s32 %s80, 1
      %p84 = scmp.eq.s32.totalorder %s25, 1
      %p85 = scmp.ne.s32.totalorder %s80, %s82
      %p86 = scmp.eq.s32.totalorder %s25, 0
      %p87 = por %p85, %p86
      %p88 = scmp.ne.s32.totalorder %s80, %s82
      %p89 = scmp.eq.s32.totalorder %s30, 1
      %p90 = por %p88, %p89
      %p91 = scmp.ne.s32.totalorder %s82, %s83
      %p92 = scmp.eq.s32.totalorder %s30, 0
      %p93 = por %p91, %p92
      %p94 = scmp.ne.s32.totalorder %s82, %s83
      %p95 = scmp.eq.s32.totalorder %s31, 1
      %p96 = por %p94, %p95
      %p98 = scmp.ne.s32.totalorder %s83, %s97
      %p99 = scmp.eq.s32.totalorder %s31, 0
      %p100 = por %p98, %p99
      %s102 = sadd.s32 %s101, 1
      %p105 = scmp.eq.s32.totalorder %s25, 1
      %p106 = scmp.ne.s32.totalorder %s101, %s103
      %p107 = scmp.eq.s32.totalorder %s25, 0
      %p108 = por %p106, %p107
      %p109 = scmp.ne.s32.totalorder %s101, %s103
      %p110 = scmp.eq.s32.totalorder %s30, 1
      %p111 = por %p109, %p110
      %p112 = scmp.ne.s32.totalorder %s103, %s104
      %p113 = scmp.eq.s32.totalorder %s30, 0
      %p114 = por %p112, %p113
      %p115 = scmp.ne.s32.totalorder %s103, %s104
      %p116 = scmp.eq.s32.totalorder %s31, 1
      %p117 = por %p115, %p116
      %p119 = scmp.ne.s32.totalorder %s104, %s118
      %p120 = scmp.eq.s32.totalorder %s31, 0
      %p121 = por %p119, %p120
      %s123 = sadd.s32 %s122, 1
      %p126 = scmp.eq.s32.totalorder %s25, 1
      %p127 = scmp.ne.s32.totalorder %s122, %s124
      %p128 = scmp.eq.s32.totalorder %s25, 0
      %p129 = por %p127, %p128
      %p130 = scmp.ne.s32.totalorder %s122, %s124
      %p131 = scmp.eq.s32.totalorder %s30, 1
      %p132 = por %p130, %p131
      %p133 = scmp.ne.s32.totalorder %s124, %s125
      %p134 = scmp.eq.s32.totalorder %s30, 0
      %p135 = por %p133, %p134
      %p136 = scmp.ne.s32.totalorder %s124, %s125
      %p137 = scmp.eq.s32.totalorder %s31, 1
      %p138 = por %p136, %p137
      %p140 = scmp.ne.s32.totalorder %s125, %s139
      %p141 = scmp.eq.s32.totalorder %s31, 0
      %p142 = por %p140, %p141
      %s144 = sadd.s32 %s143, 1
      %p147 = scmp.eq.s32.totalorder %s25, 1
      %p148 = scmp.ne.s32.totalorder %s143, %s145
      %p149 = scmp.eq.s32.totalorder %s25, 0
      %p150 = por %p148, %p149
      %p151 = scmp.ne.s32.totalorder %s143, %s145
      %p152 = scmp.eq.s32.totalorder %s30, 1
      %p153 = por %p151, %p152
      %p154 = scmp.ne.s32.totalorder %s145, %s146
      %p155 = scmp.eq.s32.totalorder %s30, 0
      %p156 = por %p154, %p155
      %p157 = scmp.ne.s32.totalorder %s145, %s146
      %p158 = scmp.eq.s32.totalorder %s31, 1
      %p159 = por %p157, %p158
      %p161 = scmp.ne.s32.totalorder %s146, %s160
      %p162 = scmp.eq.s32.totalorder %s31, 0
      %p163 = por %p161, %p162
      %s165 = sadd.s32 %s164, 1
      %p168 = scmp.eq.s32.totalorder %s25, 1
      %p169 = scmp.ne.s32.totalorder %s164, %s166
      %p170 = scmp.eq.s32.totalorder %s25, 0
      %p171 = por %p169, %p170
      %p172 = scmp.ne.s32.totalorder %s164, %s166
      %p173 = scmp.eq.s32.totalorder %s30, 1
      %p174 = por %p172, %p173
      %p175 = scmp.ne.s32.totalorder %s166, %s167
      %p176 = scmp.eq.s32.totalorder %s30, 0
      %p177 = por %p175, %p176
      %p178 = scmp.ne.s32.totalorder %s166, %s167
      %p179 = scmp.eq.s32.totalorder %s31, 1
      %p180 = por %p178, %p179
      %p182 = scmp.ne.s32.totalorder %s167, %s181
      %p183 = scmp.eq.s32.totalorder %s31, 0
      %p184 = por %p182, %p183
      %s186 = sadd.s32 %s185, 1
      %p189 = scmp.eq.s32.totalorder %s25, 1
      %p190 = scmp.ne.s32.totalorder %s185, %s187
      %p191 = scmp.eq.s32.totalorder %s25, 0
      %p192 = por %p190, %p191
      %p193 = scmp.ne.s32.totalorder %s185, %s187
      %p194 = scmp.eq.s32.totalorder %s30, 1
      %p195 = por %p193, %p194
      %p196 = scmp.ne.s32.totalorder %s187, %s188
      %p197 = scmp.eq.s32.totalorder %s30, 0
      %p198 = por %p196, %p197
      %p199 = scmp.ne.s32.totalorder %s187, %s188
      %p200 = scmp.eq.s32.totalorder %s31, 1
      %p201 = por %p199, %p200
      %p203 = scmp.ne.s32.totalorder %s188, %s202
      %p204 = scmp.eq.s32.totalorder %s31, 0
      %p205 = por %p203, %p204
      %s207 = sadd.s32 %s206, 1
      %p210 = scmp.eq.s32.totalorder %s25, 1
      %p211 = scmp.ne.s32.totalorder %s206, %s208
      %p212 = scmp.eq.s32.totalorder %s25, 0
      %p213 = por %p211, %p212
      %p214 = scmp.ne.s32.totalorder %s206, %s208
      %p215 = scmp.eq.s32.totalorder %s30, 1
      %p216 = por %p214, %p215
      %p217 = scmp.ne.s32.totalorder %s208, %s209
      %p218 = scmp.eq.s32.totalorder %s30, 0
      %p219 = por %p217, %p218
      %p220 = scmp.ne.s32.totalorder %s208, %s209
      %p221 = scmp.eq.s32.totalorder %s31, 1
      %p222 = por %p220, %p221
      %p224 = scmp.ne.s32.totalorder %s209, %s223
      %p225 = scmp.eq.s32.totalorder %s31, 0
      %p226 = por %p224, %p225
      %s227 = ssub.s32 %s25, %s32
      %p228 = scmp.eq.s32.totalorder %s227, 0
      %s230 = sadd.s32 %s229, 1
      %s231 = scalar_select %p228, %s229, %s230
      %p234 = pneg %p228
      %p235 = scmp.eq.s32.totalorder %s25, 1
      %p236 = por %p234, %p235
      %p237 = scmp.ne.s32.totalorder %s229, %s232
      %p238 = scmp.eq.s32.totalorder %s25, 0
      %p239 = por %p237, %p238
      %p240 = scmp.ne.s32.totalorder %s229, %s232
      %p241 = scmp.eq.s32.totalorder %s30, 1
      %p242 = por %p240, %p241
      %p243 = scmp.ne.s32.totalorder %s232, %s233
      %p244 = scmp.eq.s32.totalorder %s30, 0
      %p245 = por %p243, %p244
      %p246 = scmp.ne.s32.totalorder %s232, %s233
      %p247 = scmp.eq.s32.totalorder %s31, 1
      %p248 = por %p246, %p247
      %p250 = scmp.ne.s32.totalorder %s233, %s249
      %p251 = scmp.eq.s32.totalorder %s31, 0
      %p252 = por %p250, %p251
      %p253 = scmp.le.s32.totalorder 1, %s25
      %p254 = scmp.lt.s32.totalorder %s25, 3
      %p255 = pnand %p253, %p254
      %p256 = pneg %p255
      // Predicated region
      $region9: #{tpu_custom_call.1} parent=5 // pred_check
        _
      $region10: #{tpu_custom_call.1} parent=5 // pred_check_branch
        %258 = sbr.rel (%p255) target = $region12
      $region11: #{tpu_custom_call.1} parent=5 // pred_region
        %s259 = ssub.s32 %s25, 1
        // Predicated region
        $region13: #{tpu_custom_call.1} parent=11 // pred_check
          %p260 = pneg %p72
        $region14: #{tpu_custom_call.1} parent=11 // pred_check_branch
          %262 = sbr.rel (%p260) target = $region16
        $region15: #{tpu_custom_call.1} parent=11 // pred_region
          %s264 = ssub.s32 384, 384
          %265 = vsyncadd [#allocation6], %s264
          %s266 = sshll.u32 [#allocation5], 4
          %s267 = int_to_ptr.vmem [resolvable:$true] %s266
          %272 = dma.hbm_to_vmem [thread:$0]  %s1, 384, %s267, [#allocation6], 64, 64, 4
        $region16: #{tpu_custom_call.1} parent=11 // pred_fallthru
          _
        // Predicated region
        $region17: #{tpu_custom_call.1} parent=11 // pred_check
          %p273 = pneg %p93
        $region18: #{tpu_custom_call.1} parent=11 // pred_check_branch
          %275 = sbr.rel (%p273) target = $region20
        $region19: #{tpu_custom_call.1} parent=11 // pred_region
          %s277 = ssub.s32 16, 16
          %278 = vsyncadd [#allocation6], %s277
          %s280 = sshll.u32 [#allocation7], 4
          %s281 = int_to_ptr.vmem [resolvable:$true] %s280
          %283 = dma.hbm_to_vmem [thread:$0]  %s2, 16, %s281, [#allocation6]
        $region20: #{tpu_custom_call.1} parent=11 // pred_fallthru
          _
        // Predicated region
        $region21: #{tpu_custom_call.1} parent=11 // pred_check
          %p284 = pneg %p114
        $region22: #{tpu_custom_call.1} parent=11 // pred_check_branch
          %286 = sbr.rel (%p284) target = $region24
        $region23: #{tpu_custom_call.1} parent=11 // pred_region
          %s288 = ssub.s32 1024, 1024
          %289 = vsyncadd [#allocation9], %s288
          %s290 = sshll.u32 [#allocation8], 4
          %s291 = int_to_ptr.vmem [resolvable:$true] %s290
          %296 = dma.hbm_to_vmem [thread:$0]  %s3, 1024, %s291, [#allocation9], 64, 64, 4
        $region24: #{tpu_custom_call.1} parent=11 // pred_fallthru
          _
        // Predicated region
        $region25: #{tpu_custom_call.1} parent=11 // pred_check
          %p297 = pneg %p135
        $region26: #{tpu_custom_call.1} parent=11 // pred_check_branch
          %299 = sbr.rel (%p297) target = $region28
        $region27: #{tpu_custom_call.1} parent=11 // pred_region
          %s301 = ssub.s32 16, 16
          %302 = vsyncadd [#allocation9], %s301
          %s304 = sshll.u32 [#allocation10], 4
          %s305 = int_to_ptr.vmem [resolvable:$true] %s304
          %307 = dma.hbm_to_vmem [thread:$0]  %s4, 16, %s305, [#allocation9]
        $region28: #{tpu_custom_call.1} parent=11 // pred_fallthru
          _
        // Predicated region
        $region29: #{tpu_custom_call.1} parent=11 // pred_check
          %p308 = pneg %p156
        $region30: #{tpu_custom_call.1} parent=11 // pred_check_branch
          %310 = sbr.rel (%p308) target = $region32
        $region31: #{tpu_custom_call.1} parent=11 // pred_region
          %s312 = ssub.s32 2048, 2048
          %313 = vsyncadd [#allocation12], %s312
          %s314 = sshll.u32 [#allocation11], 4
          %s315 = int_to_ptr.vmem [resolvable:$true] %s314
          %320 = dma.hbm_to_vmem [thread:$0]  %s5, 2048, %s315, [#allocation12], 256, 256, 16
        $region32: #{tpu_custom_call.1} parent=11 // pred_fallthru
          _
        // Predicated region
        $region33: #{tpu_custom_call.1} parent=11 // pred_check
          %p321 = pneg %p177
        $region34: #{tpu_custom_call.1} parent=11 // pred_check_branch
          %323 = sbr.rel (%p321) target = $region36
        $region35: #{tpu_custom_call.1} parent=11 // pred_region
          %s325 = ssub.s32 64, 64
          %326 = vsyncadd [#allocation12], %s325
          %s328 = sshll.u32 [#allocation13], 4
          %s329 = int_to_ptr.vmem [resolvable:$true] %s328
          %331 = dma.hbm_to_vmem [thread:$0]  %s6, 64, %s329, [#allocation12]
        $region36: #{tpu_custom_call.1} parent=11 // pred_fallthru
          _
        // Predicated region
        $region37: #{tpu_custom_call.1} parent=11 // pred_check
          %p332 = pneg %p198
        $region38: #{tpu_custom_call.1} parent=11 // pred_check_branch
          %334 = sbr.rel (%p332) target = $region40
        $region39: #{tpu_custom_call.1} parent=11 // pred_region
          %s336 = ssub.s32 4096, 4096
          %337 = vsyncadd [#allocation15], %s336
          %s338 = sshll.u32 [#allocation14], 4
          %s339 = int_to_ptr.vmem [resolvable:$true] %s338
          %344 = dma.hbm_to_vmem [thread:$0]  %s7, 4096, %s339, [#allocation15], 64, 64, 4
        $region40: #{tpu_custom_call.1} parent=11 // pred_fallthru
          _
        // Predicated region
        $region41: #{tpu_custom_call.1} parent=11 // pred_check
          %p345 = pneg %p219
        $region42: #{tpu_custom_call.1} parent=11 // pred_check_branch
          %347 = sbr.rel (%p345) target = $region44
        $region43: #{tpu_custom_call.1} parent=11 // pred_region
          %s349 = ssub.s32 16, 16
          %350 = vsyncadd [#allocation15], %s349
          %s352 = sshll.u32 [#allocation16], 4
          %s353 = int_to_ptr.vmem [resolvable:$true] %s352
          %355 = dma.hbm_to_vmem [thread:$0]  %s8, 16, %s353, [#allocation15]
        $region44: #{tpu_custom_call.1} parent=11 // pred_fallthru
          _
      $region12: #{tpu_custom_call.1} parent=5 // pred_fallthru
        _
      %p356 = scmp.lt.s32.totalorder %s25, 2
      // Predicated region
      $region45: #{tpu_custom_call.1} parent=5 // pred_check
        %p357 = pneg %p356
      $region46: #{tpu_custom_call.1} parent=5 // pred_check_branch
        %359 = sbr.rel (%p357) target = $region48
      $region47: #{tpu_custom_call.1} parent=5 // pred_region
        // Predicated region
        $region49: #{tpu_custom_call.1} parent=47 // pred_check
          %p360 = pneg %p45
        $region50: #{tpu_custom_call.1} parent=47 // pred_check_branch
          %362 = sbr.rel (%p360) target = $region52
        $region51: #{tpu_custom_call.1} parent=47 // pred_region
          %s363 = sand.u32 %s35, 1
          %s364 = scalar_lea.sflag [#allocation3], %s363
          %s365 = sand.u32 %s35, 1
          %s366 = smul.addr %s365, 256
          %s367 = scalar_lea.vmem [#allocation2], %s366
          %s369 = ssub.s32 4096, 4096
          %370 = vsyncadd %s364, %s369
          %s371 = smul.addr %s25, 64
          %s372 = smul.addr %s371, 64
          %s373 = scalar_lea.hbm %s0, %s372
          %s374 = sshll.u32 %s367, 4
          %s375 = int_to_ptr.vmem [resolvable:$true] %s374
          %380 = dma.hbm_to_vmem [thread:$0]  %s373, 4096, %s375, %s364, 64, 64, 4
        $region52: #{tpu_custom_call.1} parent=47 // pred_fallthru
          _
      $region48: #{tpu_custom_call.1} parent=5 // pred_fallthru
        _
      %p381 = scmp.le.s32.totalorder 1, %s25
      %p382 = scmp.lt.s32.totalorder %s25, 3
      %p383 = pnand %p381, %p382
      %p384 = pneg %p383
      // Predicated region
      $region53: #{tpu_custom_call.1} parent=5 // pred_check
        _
      $region54: #{tpu_custom_call.1} parent=5 // pred_check_branch
        %386 = sbr.rel (%p383) target = $region56
      $region55: #{tpu_custom_call.1} parent=5 // pred_region
        %s387 = ssub.s32 %s25, 1
        %s388 = sand.u32 %s38, 1
        %s389 = scalar_lea.sflag [#allocation3], %s388
        %s390 = sand.u32 %s38, 1
        %s391 = smul.addr %s390, 256
        %s392 = scalar_lea.vmem [#allocation2], %s391
        // Predicated region
        $region57: #{tpu_custom_call.1} parent=55 // pred_check
          %p393 = pneg %p51
        $region58: #{tpu_custom_call.1} parent=55 // pred_check_branch
          %395 = sbr.rel (%p393) target = $region60
        $region59: #{tpu_custom_call.1} parent=55 // pred_region
          %396 = dma.done %s389, 4096
        $region60: #{tpu_custom_call.1} parent=55 // pred_fallthru
          _
        // Predicated region
        $region61: #{tpu_custom_call.1} parent=55 // pred_check
          %p397 = pneg %p72
        $region62: #{tpu_custom_call.1} parent=55 // pred_check_branch
          %399 = sbr.rel (%p397) target = $region64
        $region63: #{tpu_custom_call.1} parent=55 // pred_region
          %400 = dma.done [#allocation6], 384
        $region64: #{tpu_custom_call.1} parent=55 // pred_fallthru
          _
        // Predicated region
        $region65: #{tpu_custom_call.1} parent=55 // pred_check
          %p401 = pneg %p93
        $region66: #{tpu_custom_call.1} parent=55 // pred_check_branch
          %403 = sbr.rel (%p401) target = $region68
        $region67: #{tpu_custom_call.1} parent=55 // pred_region
          %404 = dma.done [#allocation6], 16
        $region68: #{tpu_custom_call.1} parent=55 // pred_fallthru
          _
        // Predicated region
        $region69: #{tpu_custom_call.1} parent=55 // pred_check
          %p405 = pneg %p114
        $region70: #{tpu_custom_call.1} parent=55 // pred_check_branch
          %407 = sbr.rel (%p405) target = $region72
        $region71: #{tpu_custom_call.1} parent=55 // pred_region
          %408 = dma.done [#allocation9], 1024
        $region72: #{tpu_custom_call.1} parent=55 // pred_fallthru
          _
        // Predicated region
        $region73: #{tpu_custom_call.1} parent=55 // pred_check
          %p409 = pneg %p135
        $region74: #{tpu_custom_call.1} parent=55 // pred_check_branch
          %411 = sbr.rel (%p409) target = $region76
        $region75: #{tpu_custom_call.1} parent=55 // pred_region
          %412 = dma.done [#allocation9], 16
        $region76: #{tpu_custom_call.1} parent=55 // pred_fallthru
          _
        // Predicated region
        $region77: #{tpu_custom_call.1} parent=55 // pred_check
          %p413 = pneg %p156
        $region78: #{tpu_custom_call.1} parent=55 // pred_check_branch
          %415 = sbr.rel (%p413) target = $region80
        $region79: #{tpu_custom_call.1} parent=55 // pred_region
          %416 = dma.done [#allocation12], 2048
        $region80: #{tpu_custom_call.1} parent=55 // pred_fallthru
          _
        // Predicated region
        $region81: #{tpu_custom_call.1} parent=55 // pred_check
          %p417 = pneg %p177
        $region82: #{tpu_custom_call.1} parent=55 // pred_check_branch
          %419 = sbr.rel (%p417) target = $region84
        $region83: #{tpu_custom_call.1} parent=55 // pred_region
          %420 = dma.done [#allocation12], 64
        $region84: #{tpu_custom_call.1} parent=55 // pred_fallthru
          _
        // Predicated region
        $region85: #{tpu_custom_call.1} parent=55 // pred_check
          %p421 = pneg %p198
        $region86: #{tpu_custom_call.1} parent=55 // pred_check_branch
          %423 = sbr.rel (%p421) target = $region88
        $region87: #{tpu_custom_call.1} parent=55 // pred_region
          %424 = dma.done [#allocation15], 4096
        $region88: #{tpu_custom_call.1} parent=55 // pred_fallthru
          _
        // Predicated region
        $region89: #{tpu_custom_call.1} parent=55 // pred_check
          %p425 = pneg %p219
        $region90: #{tpu_custom_call.1} parent=55 // pred_check_branch
          %427 = sbr.rel (%p425) target = $region92
        $region91: #{tpu_custom_call.1} parent=55 // pred_region
          %428 = dma.done [#allocation15], 16
        $region92: #{tpu_custom_call.1} parent=55 // pred_fallthru
          _
        %s429 = sand.u32 %s38, 1
        %s430 = scalar_lea.sflag [#allocation3], %s429
        %s431 = sand.u32 %s38, 1
        %s432 = smul.addr %s431, 256
        %s433 = scalar_lea.vmem [#allocation2], %s432
        %p434 = pneg %p51
        %p435 = pneg %p48
        %p436 = pneg %p72
        %p437 = pneg %p69
        %p438 = pneg %p93
        %p439 = pneg %p90
        %p440 = pneg %p114
        %p441 = pneg %p111
        %p442 = pneg %p135
        %p443 = pneg %p132
        %p444 = pneg %p156
        %p445 = pneg %p153
        %p446 = pneg %p177
        %p447 = pneg %p174
        %p448 = pneg %p198
        %p449 = pneg %p195
        %p450 = pneg %p219
        %p451 = pneg %p216
        %p452 = pneg %p245
        %p453 = pneg %p242
        %s454 = sand.u32 %s232, 1
        %s455 = scalar_lea.sflag [#allocation4], %s454
        %s456 = sand.u32 %s232, 1
        %s457 = smul.addr %s456, 2
        %s458 = scalar_lea.vmem [#allocation17], %s457
        %v460 = vld [vmem:[%s392] sm:$0xf]
        %v461 = vld [vmem:[%s392 + $0x4] sm:$0xf]
        %v462 = vld [vmem:[%s392 + $0x8] sm:$0xf]
        %v463 = vld [vmem:[%s392 + $0xc] sm:$0xf]
        %v464 = vld [vmem:[%s392 + $0x10] sm:$0xf]
        %v465 = vld [vmem:[%s392 + $0x14] sm:$0xf]
        %v466 = vld [vmem:[%s392 + $0x18] sm:$0xf]
        %v467 = vld [vmem:[%s392 + $0x1c] sm:$0xf]
        %v468 = vld [vmem:[%s392 + $0x20] sm:$0xf]
        %v469 = vld [vmem:[%s392 + $0x24] sm:$0xf]
        %v470 = vld [vmem:[%s392 + $0x28] sm:$0xf]
        %v471 = vld [vmem:[%s392 + $0x2c] sm:$0xf]
        %v472 = vld [vmem:[%s392 + $0x30] sm:$0xf]
        %v473 = vld [vmem:[%s392 + $0x34] sm:$0xf]
        %v474 = vld [vmem:[%s392 + $0x38] sm:$0xf]
        %v475 = vld [vmem:[%s392 + $0x3c] sm:$0xf]
        %v476 = vld [vmem:[%s392 + $0x40] sm:$0xf]
        %v477 = vld [vmem:[%s392 + $0x44] sm:$0xf]
        %v478 = vld [vmem:[%s392 + $0x48] sm:$0xf]
        %v479 = vld [vmem:[%s392 + $0x4c] sm:$0xf]
        %v480 = vld [vmem:[%s392 + $0x50] sm:$0xf]
        %v481 = vld [vmem:[%s392 + $0x54] sm:$0xf]
        %v482 = vld [vmem:[%s392 + $0x58] sm:$0xf]
        %v483 = vld [vmem:[%s392 + $0x5c] sm:$0xf]
        %v484 = vld [vmem:[%s392 + $0x60] sm:$0xf]
        %v485 = vld [vmem:[%s392 + $0x64] sm:$0xf]
        %v486 = vld [vmem:[%s392 + $0x68] sm:$0xf]
        %v487 = vld [vmem:[%s392 + $0x6c] sm:$0xf]
        %v488 = vld [vmem:[%s392 + $0x70] sm:$0xf]
        %v489 = vld [vmem:[%s392 + $0x74] sm:$0xf]
        %v490 = vld [vmem:[%s392 + $0x78] sm:$0xf]
        %v491 = vld [vmem:[%s392 + $0x7c] sm:$0xf]
        %v492 = vld [vmem:[%s392 + $0x80] sm:$0xf]
        %v493 = vld [vmem:[%s392 + $0x84] sm:$0xf]
        %v494 = vld [vmem:[%s392 + $0x88] sm:$0xf]
        %v495 = vld [vmem:[%s392 + $0x8c] sm:$0xf]
        %v496 = vld [vmem:[%s392 + $0x90] sm:$0xf]
        %v497 = vld [vmem:[%s392 + $0x94] sm:$0xf]
        %v498 = vld [vmem:[%s392 + $0x98] sm:$0xf]
        %v499 = vld [vmem:[%s392 + $0x9c] sm:$0xf]
        %v500 = vld [vmem:[%s392 + $0xa0] sm:$0xf]
        %v501 = vld [vmem:[%s392 + $0xa4] sm:$0xf]
        %v502 = vld [vmem:[%s392 + $0xa8] sm:$0xf]
        %v503 = vld [vmem:[%s392 + $0xac] sm:$0xf]
        %v504 = vld [vmem:[%s392 + $0xb0] sm:$0xf]
        %v505 = vld [vmem:[%s392 + $0xb4] sm:$0xf]
        %v506 = vld [vmem:[%s392 + $0xb8] sm:$0xf]
        %v507 = vld [vmem:[%s392 + $0xbc] sm:$0xf]
        %v508 = vld [vmem:[%s392 + $0xc0] sm:$0xf]
        %v509 = vld [vmem:[%s392 + $0xc4] sm:$0xf]
        %v510 = vld [vmem:[%s392 + $0xc8] sm:$0xf]
        %v511 = vld [vmem:[%s392 + $0xcc] sm:$0xf]
        %v512 = vld [vmem:[%s392 + $0xd0] sm:$0xf]
        %v513 = vld [vmem:[%s392 + $0xd4] sm:$0xf]
        %v514 = vld [vmem:[%s392 + $0xd8] sm:$0xf]
        %v515 = vld [vmem:[%s392 + $0xdc] sm:$0xf]
        %v516 = vld [vmem:[%s392 + $0xe0] sm:$0xf]
        %v517 = vld [vmem:[%s392 + $0xe4] sm:$0xf]
        %v518 = vld [vmem:[%s392 + $0xe8] sm:$0xf]
        %v519 = vld [vmem:[%s392 + $0xec] sm:$0xf]
        %v520 = vld [vmem:[%s392 + $0xf0] sm:$0xf]
        %v521 = vld [vmem:[%s392 + $0xf4] sm:$0xf]
        %v522 = vld [vmem:[%s392 + $0xf8] sm:$0xf]
        %v523 = vld [vmem:[%s392 + $0xfc] sm:$0xf]
        %v524 = vld [vmem:[#allocation5] sm:$0xf]
        %v525 = vld [vmem:[#allocation5 + $0x4] sm:$0xf]
        %v526 = vld [vmem:[#allocation5 + $0x8] sm:$0xf]
        %v527 = vld [vmem:[#allocation5 + $0xc] sm:$0xf]
        %v528 = vld [vmem:[#allocation5 + $0x10] sm:$0xf]
        %v529 = vld [vmem:[#allocation5 + $0x14] sm:$0xf]
        %v530 = vld [vmem:[#allocation7] sm:$0x1]
        %v532 = vlaneseq
        %v533 = vshrl.u32 %v532, 7
        %v534 = vsub.s32 0, %v533
        %v535 = vrot.slane %v530, %v534
        %v601 = vunpack.c.l.b16 %v460
        %v602 = vunpack.c.l.b16 %v461
        %v603 = vunpack.c.l.b16 %v462
        %v604 = vunpack.c.l.b16 %v463
        %v605 = vunpack.c.l.b16 %v464
        %v606 = vunpack.c.l.b16 %v465
        %v607 = vunpack.c.l.b16 %v466
        %v608 = vunpack.c.l.b16 %v467
        %v609 = vunpack.c.l.b16 %v468
        %v610 = vunpack.c.l.b16 %v469
        %v611 = vunpack.c.l.b16 %v470
        %v612 = vunpack.c.l.b16 %v471
        %v613 = vunpack.c.l.b16 %v472
        %v614 = vunpack.c.l.b16 %v473
        %v615 = vunpack.c.l.b16 %v474
        %v616 = vunpack.c.l.b16 %v475
        %v617 = vunpack.c.l.b16 %v476
        %v618 = vunpack.c.l.b16 %v477
        %v619 = vunpack.c.l.b16 %v478
        %v620 = vunpack.c.l.b16 %v479
        %v621 = vunpack.c.l.b16 %v480
        %v622 = vunpack.c.l.b16 %v481
        %v623 = vunpack.c.l.b16 %v482
        %v624 = vunpack.c.l.b16 %v483
        %v625 = vunpack.c.l.b16 %v484
        %v626 = vunpack.c.l.b16 %v485
        %v627 = vunpack.c.l.b16 %v486
        %v628 = vunpack.c.l.b16 %v487
        %v629 = vunpack.c.l.b16 %v488
        %v630 = vunpack.c.l.b16 %v489
        %v631 = vunpack.c.l.b16 %v490
        %v632 = vunpack.c.l.b16 %v491
        %v633 = vunpack.c.l.b16 %v492
        %v634 = vunpack.c.l.b16 %v493
        %v635 = vunpack.c.l.b16 %v494
        %v636 = vunpack.c.l.b16 %v495
        %v637 = vunpack.c.l.b16 %v496
        %v638 = vunpack.c.l.b16 %v497
        %v639 = vunpack.c.l.b16 %v498
        %v640 = vunpack.c.l.b16 %v499
        %v641 = vunpack.c.l.b16 %v500
        %v642 = vunpack.c.l.b16 %v501
        %v643 = vunpack.c.l.b16 %v502
        %v644 = vunpack.c.l.b16 %v503
        %v645 = vunpack.c.l.b16 %v504
        %v646 = vunpack.c.l.b16 %v505
        %v647 = vunpack.c.l.b16 %v506
        %v648 = vunpack.c.l.b16 %v507
        %v649 = vunpack.c.l.b16 %v508
        %v650 = vunpack.c.l.b16 %v509
        %v651 = vunpack.c.l.b16 %v510
        %v652 = vunpack.c.l.b16 %v511
        %v653 = vunpack.c.l.b16 %v512
        %v654 = vunpack.c.l.b16 %v513
        %v655 = vunpack.c.l.b16 %v514
        %v656 = vunpack.c.l.b16 %v515
        %v657 = vunpack.c.l.b16 %v516
        %v658 = vunpack.c.l.b16 %v517
        %v659 = vunpack.c.l.b16 %v518
        %v660 = vunpack.c.l.b16 %v519
        %v661 = vunpack.c.l.b16 %v520
        %v662 = vunpack.c.l.b16 %v521
        %v663 = vunpack.c.l.b16 %v522
        %v664 = vunpack.c.l.b16 %v523
        %v665 = vpack.c.b16 %v602, %v601
        %v666 = vpack.c.b16 %v604, %v603
        %v667 = vpack.c.b16 %v606, %v605
        %v668 = vpack.c.b16 %v608, %v607
        %v669 = vpack.c.b16 %v610, %v609
        %v670 = vpack.c.b16 %v612, %v611
        %v671 = vpack.c.b16 %v614, %v613
        %v672 = vpack.c.b16 %v616, %v615
        %v673 = vpack.c.b16 %v618, %v617
        %v674 = vpack.c.b16 %v620, %v619
        %v675 = vpack.c.b16 %v622, %v621
        %v676 = vpack.c.b16 %v624, %v623
        %v677 = vpack.c.b16 %v626, %v625
        %v678 = vpack.c.b16 %v628, %v627
        %v679 = vpack.c.b16 %v630, %v629
        %v680 = vpack.c.b16 %v632, %v631
        %v681 = vpack.c.b16 %v634, %v633
        %v682 = vpack.c.b16 %v636, %v635
        %v683 = vpack.c.b16 %v638, %v637
        %v684 = vpack.c.b16 %v640, %v639
        %v685 = vpack.c.b16 %v642, %v641
        %v686 = vpack.c.b16 %v644, %v643
        %v687 = vpack.c.b16 %v646, %v645
        %v688 = vpack.c.b16 %v648, %v647
        %v689 = vpack.c.b16 %v650, %v649
        %v690 = vpack.c.b16 %v652, %v651
        %v691 = vpack.c.b16 %v654, %v653
        %v692 = vpack.c.b16 %v656, %v655
        %v693 = vpack.c.b16 %v658, %v657
        %v694 = vpack.c.b16 %v660, %v659
        %v695 = vpack.c.b16 %v662, %v661
        %v696 = vpack.c.b16 %v664, %v663
        %v703 = vunpack.c.l.b16 %v524
        %v704 = vunpack.c.l.b16 %v525
        %v705 = vunpack.c.l.b16 %v526
        %v706 = vunpack.c.l.b16 %v527
        %v707 = vunpack.c.l.b16 %v528
        %v708 = vunpack.c.l.b16 %v529
        %v709 = vpack.c.b16 %v704, %v703
        %v710 = vpack.c.b16 %v706, %v705
        %v711 = vpack.c.b16 %v708, %v707
        %vm715 = vcmask 392192
        %v717 = vsel %vm715, %v665, 0
        %v720 = vsel %vm715, %v666, 0
        %v723 = vsel %vm715, %v667, 0
        %v726 = vsel %vm715, %v668, 0
        %v729 = vsel %vm715, %v669, 0
        %v732 = vsel %vm715, %v670, 0
        %v735 = vsel %vm715, %v671, 0
        %v738 = vsel %vm715, %v672, 0
        %v741 = vsel %vm715, %v673, 0
        %v744 = vsel %vm715, %v674, 0
        %v747 = vsel %vm715, %v675, 0
        %v750 = vsel %vm715, %v676, 0
        %v753 = vsel %vm715, %v677, 0
        %v756 = vsel %vm715, %v678, 0
        %v759 = vsel %vm715, %v679, 0
        %v762 = vsel %vm715, %v680, 0
        %v765 = vsel %vm715, %v681, 0
        %v768 = vsel %vm715, %v682, 0
        %v771 = vsel %vm715, %v683, 0
        %v774 = vsel %vm715, %v684, 0
        %v777 = vsel %vm715, %v685, 0
        %v780 = vsel %vm715, %v686, 0
        %v783 = vsel %vm715, %v687, 0
        %v786 = vsel %vm715, %v688, 0
        %v789 = vsel %vm715, %v689, 0
        %v792 = vsel %vm715, %v690, 0
        %v795 = vsel %vm715, %v691, 0
        %v798 = vsel %vm715, %v692, 0
        %v801 = vsel %vm715, %v693, 0
        %v804 = vsel %vm715, %v694, 0
        %v807 = vsel %vm715, %v695, 0
        %v810 = vsel %vm715, %v696, 0
        %812 = vmatprep.subr.bf16.mxu0 0
        %813 = vmatpush1.bf16.msra.mxu0 %v709
        %814 = vmatprep.subr.bf16.mxu0 0
        %815 = vmatpush1.bf16.msra.mxu0 %v710
        %816 = vmatprep.subr.bf16.mxu0 0
        %817 = vmatpush1.bf16.msra.mxu0 %v711
        %818 = vmatprep.subr.bf16.mxu0 0
        %819 = vmatpush1.bf16.msra.mxu0 0
        %820 = vmatprep.subr.bf16.mxu0 0
        %821 = vmatpush1.bf16.msra.mxu0 0
        %822 = vmatprep.subr.bf16.mxu0 0
        %823 = vmatpush1.bf16.msra.mxu0 0
        %824 = vmatprep.subr.bf16.mxu0 0
        %825 = vmatpush1.bf16.msra.mxu0 0
        %826 = vmatprep.subr.bf16.mxu0 0
        %827 = vmatpush1.bf16.msra.mxu0 0
        %828 = vmatprep.subr.bf16.mxu0 0
        %829 = vmatpush1.bf16.msra.mxu0 0
        %830 = vmatprep.subr.bf16.mxu0 0
        %831 = vmatpush1.bf16.msra.mxu0 0
        %832 = vmatprep.subr.bf16.mxu0 0
        %833 = vmatpush1.bf16.msra.mxu0 0
        %834 = vmatprep.subr.bf16.mxu0 0
        %835 = vmatpush1.bf16.msra.mxu0 0
        %836 = vmatprep.subr.bf16.mxu0 0
        %837 = vmatpush1.bf16.msra.mxu0 0
        %838 = vmatprep.subr.bf16.mxu0 0
        %839 = vmatpush1.bf16.msra.mxu0 0
        %840 = vmatprep.subr.bf16.mxu0 0
        %841 = vmatpush1.bf16.msra.mxu0 0
        %842 = vmatprep.subr.bf16.mxu0 0
        %843 = vmatpush1.bf16.msra.mxu0 0
        %844 = vmatprep.mubr.bf16.mxu0 0
        %845 = vmatmul.mubr.bf16.gmra.mrb[0].mxu0 %v717
        %v846 = vpop.f32.mrb[0].mxu0
        %v847 = vadd.f32 %v535, %v846
        %v848 = vpop.f32.mrb[0].mxu0
        %v849 = vpop.f32.mrb[0].mxu0
        %v850 = vadd.f32 %v535, %v849
        %v851 = vpop.f32.mrb[0].mxu0
        %852 = vmatprep.mubr.bf16.mxu0 0
        %853 = vmatmul.mubr.bf16.gmra.mrb[0].mxu0 %v720
        %v854 = vpop.f32.mrb[0].mxu0
        %v855 = vadd.f32 %v535, %v854
        %v856 = vpop.f32.mrb[0].mxu0
        %v857 = vpop.f32.mrb[0].mxu0
        %v858 = vadd.f32 %v535, %v857
        %v859 = vpop.f32.mrb[0].mxu0
        %860 = vmatprep.mubr.bf16.mxu0 0
        %861 = vmatmul.mubr.bf16.gmra.mrb[0].mxu0 %v723
        %v862 = vpop.f32.mrb[0].mxu0
        %v863 = vadd.f32 %v535, %v862
        %v864 = vpop.f32.mrb[0].mxu0
        %v865 = vpop.f32.mrb[0].mxu0
        %v866 = vadd.f32 %v535, %v865
        %v867 = vpop.f32.mrb[0].mxu0
        %868 = vmatprep.mubr.bf16.mxu0 0
        %869 = vmatmul.mubr.bf16.gmra.mrb[0].mxu0 %v726
        %v870 = vpop.f32.mrb[0].mxu0
        %v871 = vadd.f32 %v535, %v870
        %v872 = vpop.f32.mrb[0].mxu0
        %v873 = vpop.f32.mrb[0].mxu0
        %v874 = vadd.f32 %v535, %v873
        %v875 = vpop.f32.mrb[0].mxu0
        %876 = vmatprep.mubr.bf16.mxu0 0
        %877 = vmatmul.mubr.bf16.gmra.mrb[0].mxu0 %v729
        %v878 = vpop.f32.mrb[0].mxu0
        %v879 = vadd.f32 %v535, %v878
        %v880 = vpop.f32.mrb[0].mxu0
        %v881 = vpop.f32.mrb[0].mxu0
        %v882 = vadd.f32 %v535, %v881
        %v883 = vpop.f32.mrb[0].mxu0
        %884 = vmatprep.mubr.bf16.mxu0 0
        %885 = vmatmul.mubr.bf16.gmra.mrb[0].mxu0 %v732
        %v886 = vpop.f32.mrb[0].mxu0
        %v887 = vadd.f32 %v535, %v886
        %v888 = vpop.f32.mrb[0].mxu0
        %v889 = vpop.f32.mrb[0].mxu0
        %v890 = vadd.f32 %v535, %v889
        %v891 = vpop.f32.mrb[0].mxu0
        %892 = vmatprep.mubr.bf16.mxu0 0
        %893 = vmatmul.mubr.bf16.gmra.mrb[0].mxu0 %v735
        %v894 = vpop.f32.mrb[0].mxu0
        %v895 = vadd.f32 %v535, %v894
        %v896 = vpop.f32.mrb[0].mxu0
        %v897 = vpop.f32.mrb[0].mxu0
        %v898 = vadd.f32 %v535, %v897
        %v899 = vpop.f32.mrb[0].mxu0
        %900 = vmatprep.mubr.bf16.mxu0 0
        %901 = vmatmul.mubr.bf16.gmra.mrb[0].mxu0 %v738
        %v902 = vpop.f32.mrb[0].mxu0
        %v903 = vadd.f32 %v535, %v902
        %v904 = vpop.f32.mrb[0].mxu0
        %v905 = vpop.f32.mrb[0].mxu0
        %v906 = vadd.f32 %v535, %v905
        %v907 = vpop.f32.mrb[0].mxu0
        %908 = vmatprep.mubr.bf16.mxu0 0
        %909 = vmatmul.mubr.bf16.gmra.mrb[0].mxu0 %v741
        %v910 = vpop.f32.mrb[0].mxu0
        %v911 = vadd.f32 %v535, %v910
        %v912 = vpop.f32.mrb[0].mxu0
        %v913 = vpop.f32.mrb[0].mxu0
        %v914 = vadd.f32 %v535, %v913
        %v915 = vpop.f32.mrb[0].mxu0
        %916 = vmatprep.mubr.bf16.mxu0 0
        %917 = vmatmul.mubr.bf16.gmra.mrb[0].mxu0 %v744
        %v918 = vpop.f32.mrb[0].mxu0
        %v919 = vadd.f32 %v535, %v918
        %v920 = vpop.f32.mrb[0].mxu0
        %v921 = vpop.f32.mrb[0].mxu0
        %v922 = vadd.f32 %v535, %v921
        %v923 = vpop.f32.mrb[0].mxu0
        %924 = vmatprep.mubr.bf16.mxu0 0
        %925 = vmatmul.mubr.bf16.gmra.mrb[0].mxu0 %v747
        %v926 = vpop.f32.mrb[0].mxu0
        %v927 = vadd.f32 %v535, %v926
        %v928 = vpop.f32.mrb[0].mxu0
        %v929 = vpop.f32.mrb[0].mxu0
        %v930 = vadd.f32 %v535, %v929
        %v931 = vpop.f32.mrb[0].mxu0
        %932 = vmatprep.mubr.bf16.mxu0 0
        %933 = vmatmul.mubr.bf16.gmra.mrb[0].mxu0 %v750
        %v934 = vpop.f32.mrb[0].mxu0
        %v935 = vadd.f32 %v535, %v934
        %v936 = vpop.f32.mrb[0].mxu0
        %v937 = vpop.f32.mrb[0].mxu0
        %v938 = vadd.f32 %v535, %v937
        %v939 = vpop.f32.mrb[0].mxu0
        %940 = vmatprep.mubr.bf16.mxu0 0
        %941 = vmatmul.mubr.bf16.gmra.mrb[0].mxu0 %v753
        %v942 = vpop.f32.mrb[0].mxu0
        %v943 = vadd.f32 %v535, %v942
        %v944 = vpop.f32.mrb[0].mxu0
        %v945 = vpop.f32.mrb[0].mxu0
        %v946 = vadd.f32 %v535, %v945
        %v947 = vpop.f32.mrb[0].mxu0
        %948 = vmatprep.mubr.bf16.mxu0 0
        %949 = vmatmul.mubr.bf16.gmra.mrb[0].mxu0 %v756
        %v950 = vpop.f32.mrb[0].mxu0
        %v951 = vadd.f32 %v535, %v950
        %v952 = vpop.f32.mrb[0].mxu0
        %v953 = vpop.f32.mrb[0].mxu0
        %v954 = vadd.f32 %v535, %v953
        %v955 = vpop.f32.mrb[0].mxu0
        %956 = vmatprep.mubr.bf16.mxu0 0
        %957 = vmatmul.mubr.bf16.gmra.mrb[0].mxu0 %v759
        %v958 = vpop.f32.mrb[0].mxu0
        %v959 = vadd.f32 %v535, %v958
        %v960 = vpop.f32.mrb[0].mxu0
        %v961 = vpop.f32.mrb[0].mxu0
        %v962 = vadd.f32 %v535, %v961
        %v963 = vpop.f32.mrb[0].mxu0
        %964 = vmatprep.mubr.bf16.mxu0 0
        %965 = vmatmul.mubr.bf16.gmra.mrb[0].mxu0 %v762
        %v966 = vpop.f32.mrb[0].mxu0
        %v967 = vadd.f32 %v535, %v966
        %v968 = vpop.f32.mrb[0].mxu0
        %v969 = vpop.f32.mrb[0].mxu0
        %v970 = vadd.f32 %v535, %v969
        %v971 = vpop.f32.mrb[0].mxu0
        %972 = vmatprep.mubr.bf16.mxu0 0
        %973 = vmatmul.mubr.bf16.gmra.mrb[0].mxu0 %v765
        %v974 = vpop.f32.mrb[0].mxu0
        %v975 = vadd.f32 %v535, %v974
        %v976 = vpop.f32.mrb[0].mxu0
        %v977 = vpop.f32.mrb[0].mxu0
        %v978 = vadd.f32 %v535, %v977
        %v979 = vpop.f32.mrb[0].mxu0
        %980 = vmatprep.mubr.bf16.mxu0 0
        %981 = vmatmul.mubr.bf16.gmra.mrb[0].mxu0 %v768
        %v982 = vpop.f32.mrb[0].mxu0
        %v983 = vadd.f32 %v535, %v982
        %v984 = vpop.f32.mrb[0].mxu0
        %v985 = vpop.f32.mrb[0].mxu0
        %v986 = vadd.f32 %v535, %v985
        %v987 = vpop.f32.mrb[0].mxu0
        %988 = vmatprep.mubr.bf16.mxu0 0
        %989 = vmatmul.mubr.bf16.gmra.mrb[0].mxu0 %v771
        %v990 = vpop.f32.mrb[0].mxu0
        %v991 = vadd.f32 %v535, %v990
        %v992 = vpop.f32.mrb[0].mxu0
        %v993 = vpop.f32.mrb[0].mxu0
        %v994 = vadd.f32 %v535, %v993
        %v995 = vpop.f32.mrb[0].mxu0
        %996 = vmatprep.mubr.bf16.mxu0 0
        %997 = vmatmul.mubr.bf16.gmra.mrb[0].mxu0 %v774
        %v998 = vpop.f32.mrb[0].mxu0
        %v999 = vadd.f32 %v535, %v998
        %v1000 = vpop.f32.mrb[0].mxu0
        %v1001 = vpop.f32.mrb[0].mxu0
        %v1002 = vadd.f32 %v535, %v1001
        %v1003 = vpop.f32.mrb[0].mxu0
        %1004 = vmatprep.mubr.bf16.mxu0 0
        %1005 = vmatmul.mubr.bf16.gmra.mrb[0].mxu0 %v777
        %v1006 = vpop.f32.mrb[0].mxu0
        %v1007 = vadd.f32 %v535, %v1006
        %v1008 = vpop.f32.mrb[0].mxu0
        %v1009 = vpop.f32.mrb[0].mxu0
        %v1010 = vadd.f32 %v535, %v1009
        %v1011 = vpop.f32.mrb[0].mxu0
        %1012 = vmatprep.mubr.bf16.mxu0 0
        %1013 = vmatmul.mubr.bf16.gmra.mrb[0].mxu0 %v780
        %v1014 = vpop.f32.mrb[0].mxu0
        %v1015 = vadd.f32 %v535, %v1014
        %v1016 = vpop.f32.mrb[0].mxu0
        %v1017 = vpop.f32.mrb[0].mxu0
        %v1018 = vadd.f32 %v535, %v1017
        %v1019 = vpop.f32.mrb[0].mxu0
        %1020 = vmatprep.mubr.bf16.mxu0 0
        %1021 = vmatmul.mubr.bf16.gmra.mrb[0].mxu0 %v783
        %v1022 = vpop.f32.mrb[0].mxu0
        %v1023 = vadd.f32 %v535, %v1022
        %v1024 = vpop.f32.mrb[0].mxu0
        %v1025 = vpop.f32.mrb[0].mxu0
        %v1026 = vadd.f32 %v535, %v1025
        %v1027 = vpop.f32.mrb[0].mxu0
        %1028 = vmatprep.mubr.bf16.mxu0 0
        %1029 = vmatmul.mubr.bf16.gmra.mrb[0].mxu0 %v786
        %v1030 = vpop.f32.mrb[0].mxu0
        %v1031 = vadd.f32 %v535, %v1030
        %v1032 = vpop.f32.mrb[0].mxu0
        %v1033 = vpop.f32.mrb[0].mxu0
        %v1034 = vadd.f32 %v535, %v1033
        %v1035 = vpop.f32.mrb[0].mxu0
        %1036 = vmatprep.mubr.bf16.mxu0 0
        %1037 = vmatmul.mubr.bf16.gmra.mrb[0].mxu0 %v789
        %v1038 = vpop.f32.mrb[0].mxu0
        %v1039 = vadd.f32 %v535, %v1038
        %v1040 = vpop.f32.mrb[0].mxu0
        %v1041 = vpop.f32.mrb[0].mxu0
        %v1042 = vadd.f32 %v535, %v1041
        %v1043 = vpop.f32.mrb[0].mxu0
        %1044 = vmatprep.mubr.bf16.mxu0 0
        %1045 = vmatmul.mubr.bf16.gmra.mrb[0].mxu0 %v792
        %v1046 = vpop.f32.mrb[0].mxu0
        %v1047 = vadd.f32 %v535, %v1046
        %v1048 = vpop.f32.mrb[0].mxu0
        %v1049 = vpop.f32.mrb[0].mxu0
        %v1050 = vadd.f32 %v535, %v1049
        %v1051 = vpop.f32.mrb[0].mxu0
        %1052 = vmatprep.mubr.bf16.mxu0 0
        %1053 = vmatmul.mubr.bf16.gmra.mrb[0].mxu0 %v795
        %v1054 = vpop.f32.mrb[0].mxu0
        %v1055 = vadd.f32 %v535, %v1054
        %v1056 = vpop.f32.mrb[0].mxu0
        %v1057 = vpop.f32.mrb[0].mxu0
        %v1058 = vadd.f32 %v535, %v1057
        %v1059 = vpop.f32.mrb[0].mxu0
        %1060 = vmatprep.mubr.bf16.mxu0 0
        %1061 = vmatmul.mubr.bf16.gmra.mrb[0].mxu0 %v798
        %v1062 = vpop.f32.mrb[0].mxu0
        %v1063 = vadd.f32 %v535, %v1062
        %v1064 = vpop.f32.mrb[0].mxu0
        %v1065 = vpop.f32.mrb[0].mxu0
        %v1066 = vadd.f32 %v535, %v1065
        %v1067 = vpop.f32.mrb[0].mxu0
        %1068 = vmatprep.mubr.bf16.mxu0 0
        %1069 = vmatmul.mubr.bf16.gmra.mrb[0].mxu0 %v801
        %v1070 = vpop.f32.mrb[0].mxu0
        %v1071 = vadd.f32 %v535, %v1070
        %v1072 = vpop.f32.mrb[0].mxu0
        %v1073 = vpop.f32.mrb[0].mxu0
        %v1074 = vadd.f32 %v535, %v1073
        %v1075 = vpop.f32.mrb[0].mxu0
        %1076 = vmatprep.mubr.bf16.mxu0 0
        %1077 = vmatmul.mubr.bf16.gmra.mrb[0].mxu0 %v804
        %v1078 = vpop.f32.mrb[0].mxu0
        %v1079 = vadd.f32 %v535, %v1078
        %v1080 = vpop.f32.mrb[0].mxu0
        %v1081 = vpop.f32.mrb[0].mxu0
        %v1082 = vadd.f32 %v535, %v1081
        %v1083 = vpop.f32.mrb[0].mxu0
        %1084 = vmatprep.mubr.bf16.mxu0 0
        %1085 = vmatmul.mubr.bf16.gmra.mrb[0].mxu0 %v807
        %v1086 = vpop.f32.mrb[0].mxu0
        %v1087 = vadd.f32 %v535, %v1086
        %v1088 = vpop.f32.mrb[0].mxu0
        %v1089 = vpop.f32.mrb[0].mxu0
        %v1090 = vadd.f32 %v535, %v1089
        %v1091 = vpop.f32.mrb[0].mxu0
        %1092 = vmatprep.mubr.bf16.mxu0 0
        %1093 = vmatmul.mubr.bf16.gmra.mrb[0].mxu0 %v810
        %v1094 = vpop.f32.mrb[0].mxu0
        %v1095 = vadd.f32 %v535, %v1094
        %v1096 = vpop.f32.mrb[0].mxu0
        %v1097 = vpop.f32.mrb[0].mxu0
        %v1098 = vadd.f32 %v535, %v1097
        %v1099 = vpop.f32.mrb[0].mxu0
        %1100 = vdwg.mxu0
        %v1101 = vmax.f32 %v847, 0.0
        %v1102 = vmax.f32 %v850, 0.0
        %v1103 = vmax.f32 %v855, 0.0
        %v1104 = vmax.f32 %v858, 0.0
        %v1105 = vmax.f32 %v863, 0.0
        %v1106 = vmax.f32 %v866, 0.0
        %v1107 = vmax.f32 %v871, 0.0
        %v1108 = vmax.f32 %v874, 0.0
        %v1109 = vmax.f32 %v879, 0.0
        %v1110 = vmax.f32 %v882, 0.0
        %v1111 = vmax.f32 %v887, 0.0
        %v1112 = vmax.f32 %v890, 0.0
        %v1113 = vmax.f32 %v895, 0.0
        %v1114 = vmax.f32 %v898, 0.0
        %v1115 = vmax.f32 %v903, 0.0
        %v1116 = vmax.f32 %v906, 0.0
        %v1117 = vmax.f32 %v911, 0.0
        %v1118 = vmax.f32 %v914, 0.0
        %v1119 = vmax.f32 %v919, 0.0
        %v1120 = vmax.f32 %v922, 0.0
        %v1121 = vmax.f32 %v927, 0.0
        %v1122 = vmax.f32 %v930, 0.0
        %v1123 = vmax.f32 %v935, 0.0
        %v1124 = vmax.f32 %v938, 0.0
        %v1125 = vmax.f32 %v943, 0.0
        %v1126 = vmax.f32 %v946, 0.0
        %v1127 = vmax.f32 %v951, 0.0
        %v1128 = vmax.f32 %v954, 0.0
        %v1129 = vmax.f32 %v959, 0.0
        %v1130 = vmax.f32 %v962, 0.0
        %v1131 = vmax.f32 %v967, 0.0
        %v1132 = vmax.f32 %v970, 0.0
        %v1133 = vmax.f32 %v975, 0.0
        %v1134 = vmax.f32 %v978, 0.0
        %v1135 = vmax.f32 %v983, 0.0
        %v1136 = vmax.f32 %v986, 0.0
        %v1137 = vmax.f32 %v991, 0.0
        %v1138 = vmax.f32 %v994, 0.0
        %v1139 = vmax.f32 %v999, 0.0
        %v1140 = vmax.f32 %v1002, 0.0
        %v1141 = vmax.f32 %v1007, 0.0
        %v1142 = vmax.f32 %v1010, 0.0
        %v1143 = vmax.f32 %v1015, 0.0
        %v1144 = vmax.f32 %v1018, 0.0
        %v1145 = vmax.f32 %v1023, 0.0
        %v1146 = vmax.f32 %v1026, 0.0
        %v1147 = vmax.f32 %v1031, 0.0
        %v1148 = vmax.f32 %v1034, 0.0
        %v1149 = vmax.f32 %v1039, 0.0
        %v1150 = vmax.f32 %v1042, 0.0
        %v1151 = vmax.f32 %v1047, 0.0
        %v1152 = vmax.f32 %v1050, 0.0
        %v1153 = vmax.f32 %v1055, 0.0
        %v1154 = vmax.f32 %v1058, 0.0
        %v1155 = vmax.f32 %v1063, 0.0
        %v1156 = vmax.f32 %v1066, 0.0
        %v1157 = vmax.f32 %v1071, 0.0
        %v1158 = vmax.f32 %v1074, 0.0
        %v1159 = vmax.f32 %v1079, 0.0
        %v1160 = vmax.f32 %v1082, 0.0
        %v1161 = vmax.f32 %v1087, 0.0
        %v1162 = vmax.f32 %v1090, 0.0
        %v1163 = vmax.f32 %v1095, 0.0
        %v1164 = vmax.f32 %v1098, 0.0
        %v1165 = vpack.c.bf16 %v1102, %v1101
        %v1166 = vpack.c.bf16 %v1104, %v1103
        %v1167 = vpack.c.bf16 %v1106, %v1105
        %v1168 = vpack.c.bf16 %v1108, %v1107
        %v1169 = vpack.c.bf16 %v1110, %v1109
        %v1170 = vpack.c.bf16 %v1112, %v1111
        %v1171 = vpack.c.bf16 %v1114, %v1113
        %v1172 = vpack.c.bf16 %v1116, %v1115
        %v1173 = vpack.c.bf16 %v1118, %v1117
        %v1174 = vpack.c.bf16 %v1120, %v1119
        %v1175 = vpack.c.bf16 %v1122, %v1121
        %v1176 = vpack.c.bf16 %v1124, %v1123
        %v1177 = vpack.c.bf16 %v1126, %v1125
        %v1178 = vpack.c.bf16 %v1128, %v1127
        %v1179 = vpack.c.bf16 %v1130, %v1129
        %v1180 = vpack.c.bf16 %v1132, %v1131
        %v1181 = vpack.c.bf16 %v1134, %v1133
        %v1182 = vpack.c.bf16 %v1136, %v1135
        %v1183 = vpack.c.bf16 %v1138, %v1137
        %v1184 = vpack.c.bf16 %v1140, %v1139
        %v1185 = vpack.c.bf16 %v1142, %v1141
        %v1186 = vpack.c.bf16 %v1144, %v1143
        %v1187 = vpack.c.bf16 %v1146, %v1145
        %v1188 = vpack.c.bf16 %v1148, %v1147
        %v1189 = vpack.c.bf16 %v1150, %v1149
        %v1190 = vpack.c.bf16 %v1152, %v1151
        %v1191 = vpack.c.bf16 %v1154, %v1153
        %v1192 = vpack.c.bf16 %v1156, %v1155
        %v1193 = vpack.c.bf16 %v1158, %v1157
        %v1194 = vpack.c.bf16 %v1160, %v1159
        %v1195 = vpack.c.bf16 %v1162, %v1161
        %v1196 = vpack.c.bf16 %v1164, %v1163
        %v1197 = vld [vmem:[#allocation8] sm:$0xf]
        %v1198 = vld [vmem:[#allocation8 + $0x4] sm:$0xf]
        %v1199 = vld [vmem:[#allocation8 + $0x8] sm:$0xf]
        %v1200 = vld [vmem:[#allocation8 + $0xc] sm:$0xf]
        %v1201 = vld [vmem:[#allocation8 + $0x10] sm:$0xf]
        %v1202 = vld [vmem:[#allocation8 + $0x14] sm:$0xf]
        %v1203 = vld [vmem:[#allocation8 + $0x18] sm:$0xf]
        %v1204 = vld [vmem:[#allocation8 + $0x1c] sm:$0xf]
        %v1205 = vld [vmem:[#allocation8 + $0x20] sm:$0xf]
        %v1206 = vld [vmem:[#allocation8 + $0x24] sm:$0xf]
        %v1207 = vld [vmem:[#allocation8 + $0x28] sm:$0xf]
        %v1208 = vld [vmem:[#allocation8 + $0x2c] sm:$0xf]
        %v1209 = vld [vmem:[#allocation8 + $0x30] sm:$0xf]
        %v1210 = vld [vmem:[#allocation8 + $0x34] sm:$0xf]
        %v1211 = vld [vmem:[#allocation8 + $0x38] sm:$0xf]
        %v1212 = vld [vmem:[#allocation8 + $0x3c] sm:$0xf]
        %v1213 = vld [vmem:[#allocation10] sm:$0x1]
        %v1215 = vlaneseq
        %v1216 = vshrl.u32 %v1215, 7
        %v1217 = vsub.s32 0, %v1216
        %v1218 = vrot.slane %v1213, %v1217
        %v1236 = vunpack.c.l.b16 %v1197
        %v1237 = vunpack.c.l.b16 %v1198
        %v1238 = vunpack.c.l.b16 %v1199
        %v1239 = vunpack.c.l.b16 %v1200
        %v1240 = vunpack.c.l.b16 %v1201
        %v1241 = vunpack.c.l.b16 %v1202
        %v1242 = vunpack.c.l.b16 %v1203
        %v1243 = vunpack.c.l.b16 %v1204
        %v1244 = vunpack.c.l.b16 %v1205
        %v1245 = vunpack.c.l.b16 %v1206
        %v1246 = vunpack.c.l.b16 %v1207
        %v1247 = vunpack.c.l.b16 %v1208
        %v1248 = vunpack.c.l.b16 %v1209
        %v1249 = vunpack.c.l.b16 %v1210
        %v1250 = vunpack.c.l.b16 %v1211
        %v1251 = vunpack.c.l.b16 %v1212
        %v1252 = vpack.c.b16 %v1237, %v1236
        %v1253 = vpack.c.b16 %v1239, %v1238
        %v1254 = vpack.c.b16 %v1241, %v1240
        %v1255 = vpack.c.b16 %v1243, %v1242
        %v1256 = vpack.c.b16 %v1245, %v1244
        %v1257 = vpack.c.b16 %v1247, %v1246
        %v1258 = vpack.c.b16 %v1249, %v1248
        %v1259 = vpack.c.b16 %v1251, %v1250
        %1268 = vmatprep.subr.bf16.mxu0 0
        %1269 = vmatpush1.bf16.msra.mxu0 %v1252
        %1270 = vmatprep.subr.bf16.mxu0 0
        %1271 = vmatpush1.bf16.msra.mxu0 %v1253
        %1272 = vmatprep.subr.bf16.mxu0 0
        %1273 = vmatpush1.bf16.msra.mxu0 %v1254
        %1274 = vmatprep.subr.bf16.mxu0 0
        %1275 = vmatpush1.bf16.msra.mxu0 %v1255
        %1276 = vmatprep.subr.bf16.mxu0 0
        %1277 = vmatpush1.bf16.msra.mxu0 %v1256
        %1278 = vmatprep.subr.bf16.mxu0 0
        %1279 = vmatpush1.bf16.msra.mxu0 %v1257
        %1280 = vmatprep.subr.bf16.mxu0 0
        %1281 = vmatpush1.bf16.msra.mxu0 %v1258
        %1282 = vmatprep.subr.bf16.mxu0 0
        %1283 = vmatpush1.bf16.msra.mxu0 %v1259
        %1284 = vmatprep.subr.bf16.mxu0 0
        %1285 = vmatpush1.bf16.msra.mxu0 0
        %1286 = vmatprep.subr.bf16.mxu0 0
        %1287 = vmatpush1.bf16.msra.mxu0 0
        %1288 = vmatprep.subr.bf16.mxu0 0
        %1289 = vmatpush1.bf16.msra.mxu0 0
        %1290 = vmatprep.subr.bf16.mxu0 0
        %1291 = vmatpush1.bf16.msra.mxu0 0
        %1292 = vmatprep.subr.bf16.mxu0 0
        %1293 = vmatpush1.bf16.msra.mxu0 0
        %1294 = vmatprep.subr.bf16.mxu0 0
        %1295 = vmatpush1.bf16.msra.mxu0 0
        %1296 = vmatprep.subr.bf16.mxu0 0
        %1297 = vmatpush1.bf16.msra.mxu0 0
        %1298 = vmatprep.subr.bf16.mxu0 0
        %1299 = vmatpush1.bf16.msra.mxu0 0
        %1300 = vmatprep.mubr.bf16.mxu0 0
        %1301 = vmatmul.mubr.bf16.gmra.mrb[0].mxu0 %v1165
        %v1302 = vpop.f32.mrb[0].mxu0
        %v1303 = vadd.f32 %v1218, %v1302
        %v1304 = vpop.f32.mrb[0].mxu0
        %v1305 = vpop.f32.mrb[0].mxu0
        %v1306 = vadd.f32 %v1218, %v1305
        %v1307 = vpop.f32.mrb[0].mxu0
        %1308 = vmatprep.mubr.bf16.mxu0 0
        %1309 = vmatmul.mubr.bf16.gmra.mrb[0].mxu0 %v1166
        %v1310 = vpop.f32.mrb[0].mxu0
        %v1311 = vadd.f32 %v1218, %v1310
        %v1312 = vpop.f32.mrb[0].mxu0
        %v1313 = vpop.f32.mrb[0].mxu0
        %v1314 = vadd.f32 %v1218, %v1313
        %v1315 = vpop.f32.mrb[0].mxu0
        %1316 = vmatprep.mubr.bf16.mxu0 0
        %1317 = vmatmul.mubr.bf16.gmra.mrb[0].mxu0 %v1167
        %v1318 = vpop.f32.mrb[0].mxu0
        %v1319 = vadd.f32 %v1218, %v1318
        %v1320 = vpop.f32.mrb[0].mxu0
        %v1321 = vpop.f32.mrb[0].mxu0
        %v1322 = vadd.f32 %v1218, %v1321
        %v1323 = vpop.f32.mrb[0].mxu0
        %1324 = vmatprep.mubr.bf16.mxu0 0
        %1325 = vmatmul.mubr.bf16.gmra.mrb[0].mxu0 %v1168
        %v1326 = vpop.f32.mrb[0].mxu0
        %v1327 = vadd.f32 %v1218, %v1326
        %v1328 = vpop.f32.mrb[0].mxu0
        %v1329 = vpop.f32.mrb[0].mxu0
        %v1330 = vadd.f32 %v1218, %v1329
        %v1331 = vpop.f32.mrb[0].mxu0
        %1332 = vmatprep.mubr.bf16.mxu0 0
        %1333 = vmatmul.mubr.bf16.gmra.mrb[0].mxu0 %v1169
        %v1334 = vpop.f32.mrb[0].mxu0
        %v1335 = vadd.f32 %v1218, %v1334
        %v1336 = vpop.f32.mrb[0].mxu0
        %v1337 = vpop.f32.mrb[0].mxu0
        %v1338 = vadd.f32 %v1218, %v1337
        %v1339 = vpop.f32.mrb[0].mxu0
        %1340 = vmatprep.mubr.bf16.mxu0 0
        %1341 = vmatmul.mubr.bf16.gmra.mrb[0].mxu0 %v1170
        %v1342 = vpop.f32.mrb[0].mxu0
        %v1343 = vadd.f32 %v1218, %v1342
        %v1344 = vpop.f32.mrb[0].mxu0
        %v1345 = vpop.f32.mrb[0].mxu0
        %v1346 = vadd.f32 %v1218, %v1345
        %v1347 = vpop.f32.mrb[0].mxu0
        %1348 = vmatprep.mubr.bf16.mxu0 0
        %1349 = vmatmul.mubr.bf16.gmra.mrb[0].mxu0 %v1171
        %v1350 = vpop.f32.mrb[0].mxu0
        %v1351 = vadd.f32 %v1218, %v1350
        %v1352 = vpop.f32.mrb[0].mxu0
        %v1353 = vpop.f32.mrb[0].mxu0
        %v1354 = vadd.f32 %v1218, %v1353
        %v1355 = vpop.f32.mrb[0].mxu0
        %1356 = vmatprep.mubr.bf16.mxu0 0
        %1357 = vmatmul.mubr.bf16.gmra.mrb[0].mxu0 %v1172
        %v1358 = vpop.f32.mrb[0].mxu0
        %v1359 = vadd.f32 %v1218, %v1358
        %v1360 = vpop.f32.mrb[0].mxu0
        %v1361 = vpop.f32.mrb[0].mxu0
        %v1362 = vadd.f32 %v1218, %v1361
        %v1363 = vpop.f32.mrb[0].mxu0
        %1364 = vmatprep.mubr.bf16.mxu0 0
        %1365 = vmatmul.mubr.bf16.gmra.mrb[0].mxu0 %v1173
        %v1366 = vpop.f32.mrb[0].mxu0
        %v1367 = vadd.f32 %v1218, %v1366
        %v1368 = vpop.f32.mrb[0].mxu0
        %v1369 = vpop.f32.mrb[0].mxu0
        %v1370 = vadd.f32 %v1218, %v1369
        %v1371 = vpop.f32.mrb[0].mxu0
        %1372 = vmatprep.mubr.bf16.mxu0 0
        %1373 = vmatmul.mubr.bf16.gmra.mrb[0].mxu0 %v1174
        %v1374 = vpop.f32.mrb[0].mxu0
        %v1375 = vadd.f32 %v1218, %v1374
        %v1376 = vpop.f32.mrb[0].mxu0
        %v1377 = vpop.f32.mrb[0].mxu0
        %v1378 = vadd.f32 %v1218, %v1377
        %v1379 = vpop.f32.mrb[0].mxu0
        %1380 = vmatprep.mubr.bf16.mxu0 0
        %1381 = vmatmul.mubr.bf16.gmra.mrb[0].mxu0 %v1175
        %v1382 = vpop.f32.mrb[0].mxu0
        %v1383 = vadd.f32 %v1218, %v1382
        %v1384 = vpop.f32.mrb[0].mxu0
        %v1385 = vpop.f32.mrb[0].mxu0
        %v1386 = vadd.f32 %v1218, %v1385
        %v1387 = vpop.f32.mrb[0].mxu0
        %1388 = vmatprep.mubr.bf16.mxu0 0
        %1389 = vmatmul.mubr.bf16.gmra.mrb[0].mxu0 %v1176
        %v1390 = vpop.f32.mrb[0].mxu0
        %v1391 = vadd.f32 %v1218, %v1390
        %v1392 = vpop.f32.mrb[0].mxu0
        %v1393 = vpop.f32.mrb[0].mxu0
        %v1394 = vadd.f32 %v1218, %v1393
        %v1395 = vpop.f32.mrb[0].mxu0
        %1396 = vmatprep.mubr.bf16.mxu0 0
        %1397 = vmatmul.mubr.bf16.gmra.mrb[0].mxu0 %v1177
        %v1398 = vpop.f32.mrb[0].mxu0
        %v1399 = vadd.f32 %v1218, %v1398
        %v1400 = vpop.f32.mrb[0].mxu0
        %v1401 = vpop.f32.mrb[0].mxu0
        %v1402 = vadd.f32 %v1218, %v1401
        %v1403 = vpop.f32.mrb[0].mxu0
        %1404 = vmatprep.mubr.bf16.mxu0 0
        %1405 = vmatmul.mubr.bf16.gmra.mrb[0].mxu0 %v1178
        %v1406 = vpop.f32.mrb[0].mxu0
        %v1407 = vadd.f32 %v1218, %v1406
        %v1408 = vpop.f32.mrb[0].mxu0
        %v1409 = vpop.f32.mrb[0].mxu0
        %v1410 = vadd.f32 %v1218, %v1409
        %v1411 = vpop.f32.mrb[0].mxu0
        %1412 = vmatprep.mubr.bf16.mxu0 0
        %1413 = vmatmul.mubr.bf16.gmra.mrb[0].mxu0 %v1179
        %v1414 = vpop.f32.mrb[0].mxu0
        %v1415 = vadd.f32 %v1218, %v1414
        %v1416 = vpop.f32.mrb[0].mxu0
        %v1417 = vpop.f32.mrb[0].mxu0
        %v1418 = vadd.f32 %v1218, %v1417
        %v1419 = vpop.f32.mrb[0].mxu0
        %1420 = vmatprep.mubr.bf16.mxu0 0
        %1421 = vmatmul.mubr.bf16.gmra.mrb[0].mxu0 %v1180
        %v1422 = vpop.f32.mrb[0].mxu0
        %v1423 = vadd.f32 %v1218, %v1422
        %v1424 = vpop.f32.mrb[0].mxu0
        %v1425 = vpop.f32.mrb[0].mxu0
        %v1426 = vadd.f32 %v1218, %v1425
        %v1427 = vpop.f32.mrb[0].mxu0
        %1428 = vmatprep.mubr.bf16.mxu0 0
        %1429 = vmatmul.mubr.bf16.gmra.mrb[0].mxu0 %v1181
        %v1430 = vpop.f32.mrb[0].mxu0
        %v1431 = vadd.f32 %v1218, %v1430
        %v1432 = vpop.f32.mrb[0].mxu0
        %v1433 = vpop.f32.mrb[0].mxu0
        %v1434 = vadd.f32 %v1218, %v1433
        %v1435 = vpop.f32.mrb[0].mxu0
        %1436 = vmatprep.mubr.bf16.mxu0 0
        %1437 = vmatmul.mubr.bf16.gmra.mrb[0].mxu0 %v1182
        %v1438 = vpop.f32.mrb[0].mxu0
        %v1439 = vadd.f32 %v1218, %v1438
        %v1440 = vpop.f32.mrb[0].mxu0
        %v1441 = vpop.f32.mrb[0].mxu0
        %v1442 = vadd.f32 %v1218, %v1441
        %v1443 = vpop.f32.mrb[0].mxu0
        %1444 = vmatprep.mubr.bf16.mxu0 0
        %1445 = vmatmul.mubr.bf16.gmra.mrb[0].mxu0 %v1183
        %v1446 = vpop.f32.mrb[0].mxu0
        %v1447 = vadd.f32 %v1218, %v1446
        %v1448 = vpop.f32.mrb[0].mxu0
        %v1449 = vpop.f32.mrb[0].mxu0
        %v1450 = vadd.f32 %v1218, %v1449
        %v1451 = vpop.f32.mrb[0].mxu0
        %1452 = vmatprep.mubr.bf16.mxu0 0
        %1453 = vmatmul.mubr.bf16.gmra.mrb[0].mxu0 %v1184
        %v1454 = vpop.f32.mrb[0].mxu0
        %v1455 = vadd.f32 %v1218, %v1454
        %v1456 = vpop.f32.mrb[0].mxu0
        %v1457 = vpop.f32.mrb[0].mxu0
        %v1458 = vadd.f32 %v1218, %v1457
        %v1459 = vpop.f32.mrb[0].mxu0
        %1460 = vmatprep.mubr.bf16.mxu0 0
        %1461 = vmatmul.mubr.bf16.gmra.mrb[0].mxu0 %v1185
        %v1462 = vpop.f32.mrb[0].mxu0
        %v1463 = vadd.f32 %v1218, %v1462
        %v1464 = vpop.f32.mrb[0].mxu0
        %v1465 = vpop.f32.mrb[0].mxu0
        %v1466 = vadd.f32 %v1218, %v1465
        %v1467 = vpop.f32.mrb[0].mxu0
        %1468 = vmatprep.mubr.bf16.mxu0 0
        %1469 = vmatmul.mubr.bf16.gmra.mrb[0].mxu0 %v1186
        %v1470 = vpop.f32.mrb[0].mxu0
        %v1471 = vadd.f32 %v1218, %v1470
        %v1472 = vpop.f32.mrb[0].mxu0
        %v1473 = vpop.f32.mrb[0].mxu0
        %v1474 = vadd.f32 %v1218, %v1473
        %v1475 = vpop.f32.mrb[0].mxu0
        %1476 = vmatprep.mubr.bf16.mxu0 0
        %1477 = vmatmul.mubr.bf16.gmra.mrb[0].mxu0 %v1187
        %v1478 = vpop.f32.mrb[0].mxu0
        %v1479 = vadd.f32 %v1218, %v1478
        %v1480 = vpop.f32.mrb[0].mxu0
        %v1481 = vpop.f32.mrb[0].mxu0
        %v1482 = vadd.f32 %v1218, %v1481
        %v1483 = vpop.f32.mrb[0].mxu0
        %1484 = vmatprep.mubr.bf16.mxu0 0
        %1485 = vmatmul.mubr.bf16.gmra.mrb[0].mxu0 %v1188
        %v1486 = vpop.f32.mrb[0].mxu0
        %v1487 = vadd.f32 %v1218, %v1486
        %v1488 = vpop.f32.mrb[0].mxu0
        %v1489 = vpop.f32.mrb[0].mxu0
        %v1490 = vadd.f32 %v1218, %v1489
        %v1491 = vpop.f32.mrb[0].mxu0
        %1492 = vmatprep.mubr.bf16.mxu0 0
        %1493 = vmatmul.mubr.bf16.gmra.mrb[0].mxu0 %v1189
        %v1494 = vpop.f32.mrb[0].mxu0
        %v1495 = vadd.f32 %v1218, %v1494
        %v1496 = vpop.f32.mrb[0].mxu0
        %v1497 = vpop.f32.mrb[0].mxu0
        %v1498 = vadd.f32 %v1218, %v1497
        %v1499 = vpop.f32.mrb[0].mxu0
        %1500 = vmatprep.mubr.bf16.mxu0 0
        %1501 = vmatmul.mubr.bf16.gmra.mrb[0].mxu0 %v1190
        %v1502 = vpop.f32.mrb[0].mxu0
        %v1503 = vadd.f32 %v1218, %v1502
        %v1504 = vpop.f32.mrb[0].mxu0
        %v1505 = vpop.f32.mrb[0].mxu0
        %v1506 = vadd.f32 %v1218, %v1505
        %v1507 = vpop.f32.mrb[0].mxu0
        %1508 = vmatprep.mubr.bf16.mxu0 0
        %1509 = vmatmul.mubr.bf16.gmra.mrb[0].mxu0 %v1191
        %v1510 = vpop.f32.mrb[0].mxu0
        %v1511 = vadd.f32 %v1218, %v1510
        %v1512 = vpop.f32.mrb[0].mxu0
        %v1513 = vpop.f32.mrb[0].mxu0
        %v1514 = vadd.f32 %v1218, %v1513
        %v1515 = vpop.f32.mrb[0].mxu0
        %1516 = vmatprep.mubr.bf16.mxu0 0
        %1517 = vmatmul.mubr.bf16.gmra.mrb[0].mxu0 %v1192
        %v1518 = vpop.f32.mrb[0].mxu0
        %v1519 = vadd.f32 %v1218, %v1518
        %v1520 = vpop.f32.mrb[0].mxu0
        %v1521 = vpop.f32.mrb[0].mxu0
        %v1522 = vadd.f32 %v1218, %v1521
        %v1523 = vpop.f32.mrb[0].mxu0
        %1524 = vmatprep.mubr.bf16.mxu0 0
        %1525 = vmatmul.mubr.bf16.gmra.mrb[0].mxu0 %v1193
        %v1526 = vpop.f32.mrb[0].mxu0
        %v1527 = vadd.f32 %v1218, %v1526
        %v1528 = vpop.f32.mrb[0].mxu0
        %v1529 = vpop.f32.mrb[0].mxu0
        %v1530 = vadd.f32 %v1218, %v1529
        %v1531 = vpop.f32.mrb[0].mxu0
        %1532 = vmatprep.mubr.bf16.mxu0 0
        %1533 = vmatmul.mubr.bf16.gmra.mrb[0].mxu0 %v1194
        %v1534 = vpop.f32.mrb[0].mxu0
        %v1535 = vadd.f32 %v1218, %v1534
        %v1536 = vpop.f32.mrb[0].mxu0
        %v1537 = vpop.f32.mrb[0].mxu0
        %v1538 = vadd.f32 %v1218, %v1537
        %v1539 = vpop.f32.mrb[0].mxu0
        %1540 = vmatprep.mubr.bf16.mxu0 0
        %1541 = vmatmul.mubr.bf16.gmra.mrb[0].mxu0 %v1195
        %v1542 = vpop.f32.mrb[0].mxu0
        %v1543 = vadd.f32 %v1218, %v1542
        %v1544 = vpop.f32.mrb[0].mxu0
        %v1545 = vpop.f32.mrb[0].mxu0
        %v1546 = vadd.f32 %v1218, %v1545
        %v1547 = vpop.f32.mrb[0].mxu0
        %1548 = vmatprep.mubr.bf16.mxu0 0
        %1549 = vmatmul.mubr.bf16.gmra.mrb[0].mxu0 %v1196
        %v1550 = vpop.f32.mrb[0].mxu0
        %v1551 = vadd.f32 %v1218, %v1550
        %v1552 = vpop.f32.mrb[0].mxu0
        %v1553 = vpop.f32.mrb[0].mxu0
        %v1554 = vadd.f32 %v1218, %v1553
        %v1555 = vpop.f32.mrb[0].mxu0
        %1556 = vdwg.mxu0
        %v1557 = vmax.f32 %v1303, 0.0
        %v1558 = vmax.f32 %v1306, 0.0
        %v1559 = vmax.f32 %v1311, 0.0
        %v1560 = vmax.f32 %v1314, 0.0
        %v1561 = vmax.f32 %v1319, 0.0
        %v1562 = vmax.f32 %v1322, 0.0
        %v1563 = vmax.f32 %v1327, 0.0
        %v1564 = vmax.f32 %v1330, 0.0
        %v1565 = vmax.f32 %v1335, 0.0
        %v1566 = vmax.f32 %v1338, 0.0
        %v1567 = vmax.f32 %v1343, 0.0
        %v1568 = vmax.f32 %v1346, 0.0
        %v1569 = vmax.f32 %v1351, 0.0
        %v1570 = vmax.f32 %v1354, 0.0
        %v1571 = vmax.f32 %v1359, 0.0
        %v1572 = vmax.f32 %v1362, 0.0
        %v1573 = vmax.f32 %v1367, 0.0
        %v1574 = vmax.f32 %v1370, 0.0
        %v1575 = vmax.f32 %v1375, 0.0
        %v1576 = vmax.f32 %v1378, 0.0
        %v1577 = vmax.f32 %v1383, 0.0
        %v1578 = vmax.f32 %v1386, 0.0
        %v1579 = vmax.f32 %v1391, 0.0
        %v1580 = vmax.f32 %v1394, 0.0
        %v1581 = vmax.f32 %v1399, 0.0
        %v1582 = vmax.f32 %v1402, 0.0
        %v1583 = vmax.f32 %v1407, 0.0
        %v1584 = vmax.f32 %v1410, 0.0
        %v1585 = vmax.f32 %v1415, 0.0
        %v1586 = vmax.f32 %v1418, 0.0
        %v1587 = vmax.f32 %v1423, 0.0
        %v1588 = vmax.f32 %v1426, 0.0
        %v1589 = vmax.f32 %v1431, 0.0
        %v1590 = vmax.f32 %v1434, 0.0
        %v1591 = vmax.f32 %v1439, 0.0
        %v1592 = vmax.f32 %v1442, 0.0
        %v1593 = vmax.f32 %v1447, 0.0
        %v1594 = vmax.f32 %v1450, 0.0
        %v1595 = vmax.f32 %v1455, 0.0
        %v1596 = vmax.f32 %v1458, 0.0
        %v1597 = vmax.f32 %v1463, 0.0
        %v1598 = vmax.f32 %v1466, 0.0
        %v1599 = vmax.f32 %v1471, 0.0
        %v1600 = vmax.f32 %v1474, 0.0
        %v1601 = vmax.f32 %v1479, 0.0
        %v1602 = vmax.f32 %v1482, 0.0
        %v1603 = vmax.f32 %v1487, 0.0
        %v1604 = vmax.f32 %v1490, 0.0
        %v1605 = vmax.f32 %v1495, 0.0
        %v1606 = vmax.f32 %v1498, 0.0
        %v1607 = vmax.f32 %v1503, 0.0
        %v1608 = vmax.f32 %v1506, 0.0
        %v1609 = vmax.f32 %v1511, 0.0
        %v1610 = vmax.f32 %v1514, 0.0
        %v1611 = vmax.f32 %v1519, 0.0
        %v1612 = vmax.f32 %v1522, 0.0
        %v1613 = vmax.f32 %v1527, 0.0
        %v1614 = vmax.f32 %v1530, 0.0
        %v1615 = vmax.f32 %v1535, 0.0
        %v1616 = vmax.f32 %v1538, 0.0
        %v1617 = vmax.f32 %v1543, 0.0
        %v1618 = vmax.f32 %v1546, 0.0
        %v1619 = vmax.f32 %v1551, 0.0
        %v1620 = vmax.f32 %v1554, 0.0
        %v1621 = vsub.f32 0.0, %v1557
        %v1622 = vsub.f32 0.0, %v1558
        %v1623 = vsub.f32 0.0, %v1559
        %v1624 = vsub.f32 0.0, %v1560
        %v1625 = vsub.f32 0.0, %v1561
        %v1626 = vsub.f32 0.0, %v1562
        %v1627 = vsub.f32 0.0, %v1563
        %v1628 = vsub.f32 0.0, %v1564
        %v1629 = vsub.f32 0.0, %v1565
        %v1630 = vsub.f32 0.0, %v1566
        %v1631 = vsub.f32 0.0, %v1567
        %v1632 = vsub.f32 0.0, %v1568
        %v1633 = vsub.f32 0.0, %v1569
        %v1634 = vsub.f32 0.0, %v1570
        %v1635 = vsub.f32 0.0, %v1571
        %v1636 = vsub.f32 0.0, %v1572
        %v1637 = vsub.f32 0.0, %v1573
        %v1638 = vsub.f32 0.0, %v1574
        %v1639 = vsub.f32 0.0, %v1575
        %v1640 = vsub.f32 0.0, %v1576
        %v1641 = vsub.f32 0.0, %v1577
        %v1642 = vsub.f32 0.0, %v1578
        %v1643 = vsub.f32 0.0, %v1579
        %v1644 = vsub.f32 0.0, %v1580
        %v1645 = vsub.f32 0.0, %v1581
        %v1646 = vsub.f32 0.0, %v1582
        %v1647 = vsub.f32 0.0, %v1583
        %v1648 = vsub.f32 0.0, %v1584
        %v1649 = vsub.f32 0.0, %v1585
        %v1650 = vsub.f32 0.0, %v1586
        %v1651 = vsub.f32 0.0, %v1587
        %v1652 = vsub.f32 0.0, %v1588
        %v1653 = vsub.f32 0.0, %v1589
        %v1654 = vsub.f32 0.0, %v1590
        %v1655 = vsub.f32 0.0, %v1591
        %v1656 = vsub.f32 0.0, %v1592
        %v1657 = vsub.f32 0.0, %v1593
        %v1658 = vsub.f32 0.0, %v1594
        %v1659 = vsub.f32 0.0, %v1595
        %v1660 = vsub.f32 0.0, %v1596
        %v1661 = vsub.f32 0.0, %v1597
        %v1662 = vsub.f32 0.0, %v1598
        %v1663 = vsub.f32 0.0, %v1599
        %v1664 = vsub.f32 0.0, %v1600
        %v1665 = vsub.f32 0.0, %v1601
        %v1666 = vsub.f32 0.0, %v1602
        %v1667 = vsub.f32 0.0, %v1603
        %v1668 = vsub.f32 0.0, %v1604
        %v1669 = vsub.f32 0.0, %v1605
        %v1670 = vsub.f32 0.0, %v1606
        %v1671 = vsub.f32 0.0, %v1607
        %v1672 = vsub.f32 0.0, %v1608
        %v1673 = vsub.f32 0.0, %v1609
        %v1674 = vsub.f32 0.0, %v1610
        %v1675 = vsub.f32 0.0, %v1611
        %v1676 = vsub.f32 0.0, %v1612
        %v1677 = vsub.f32 0.0, %v1613
        %v1678 = vsub.f32 0.0, %v1614
        %v1679 = vsub.f32 0.0, %v1615
        %v1680 = vsub.f32 0.0, %v1616
        %v1681 = vsub.f32 0.0, %v1617
        %v1682 = vsub.f32 0.0, %v1618
        %v1683 = vsub.f32 0.0, %v1619
        %v1684 = vsub.f32 0.0, %v1620
        %v1685 = vmul.f32 %v1621, 1.442695
        %v1686 = vpow.pop %v1685
        %v1687 = vmul.f32 %v1622, 1.442695
        %v1688 = vpow.pop %v1687
        %v1689 = vmul.f32 %v1623, 1.442695
        %v1690 = vpow.pop %v1689
        %v1691 = vmul.f32 %v1624, 1.442695
        %v1692 = vpow.pop %v1691
        %v1693 = vmul.f32 %v1625, 1.442695
        %v1694 = vpow.pop %v1693
        %v1695 = vmul.f32 %v1626, 1.442695
        %v1696 = vpow.pop %v1695
        %v1697 = vmul.f32 %v1627, 1.442695
        %v1698 = vpow.pop %v1697
        %v1699 = vmul.f32 %v1628, 1.442695
        %v1700 = vpow.pop %v1699
        %v1701 = vmul.f32 %v1629, 1.442695
        %v1702 = vpow.pop %v1701
        %v1703 = vmul.f32 %v1630, 1.442695
        %v1704 = vpow.pop %v1703
        %v1705 = vmul.f32 %v1631, 1.442695
        %v1706 = vpow.pop %v1705
        %v1707 = vmul.f32 %v1632, 1.442695
        %v1708 = vpow.pop %v1707
        %v1709 = vmul.f32 %v1633, 1.442695
        %v1710 = vpow.pop %v1709
        %v1711 = vmul.f32 %v1634, 1.442695
        %v1712 = vpow.pop %v1711
        %v1713 = vmul.f32 %v1635, 1.442695
        %v1714 = vpow.pop %v1713
        %v1715 = vmul.f32 %v1636, 1.442695
        %v1716 = vpow.pop %v1715
        %v1717 = vmul.f32 %v1637, 1.442695
        %v1718 = vpow.pop %v1717
        %v1719 = vmul.f32 %v1638, 1.442695
        %v1720 = vpow.pop %v1719
        %v1721 = vmul.f32 %v1639, 1.442695
        %v1722 = vpow.pop %v1721
        %v1723 = vmul.f32 %v1640, 1.442695
        %v1724 = vpow.pop %v1723
        %v1725 = vmul.f32 %v1641, 1.442695
        %v1726 = vpow.pop %v1725
        %v1727 = vmul.f32 %v1642, 1.442695
        %v1728 = vpow.pop %v1727
        %v1729 = vmul.f32 %v1643, 1.442695
        %v1730 = vpow.pop %v1729
        %v1731 = vmul.f32 %v1644, 1.442695
        %v1732 = vpow.pop %v1731
        %v1733 = vmul.f32 %v1645, 1.442695
        %v1734 = vpow.pop %v1733
        %v1735 = vmul.f32 %v1646, 1.442695
        %v1736 = vpow.pop %v1735
        %v1737 = vmul.f32 %v1647, 1.442695
        %v1738 = vpow.pop %v1737
        %v1739 = vmul.f32 %v1648, 1.442695
        %v1740 = vpow.pop %v1739
        %v1741 = vmul.f32 %v1649, 1.442695
        %v1742 = vpow.pop %v1741
        %v1743 = vmul.f32 %v1650, 1.442695
        %v1744 = vpow.pop %v1743
        %v1745 = vmul.f32 %v1651, 1.442695
        %v1746 = vpow.pop %v1745
        %v1747 = vmul.f32 %v1652, 1.442695
        %v1748 = vpow.pop %v1747
        %v1749 = vmul.f32 %v1653, 1.442695
        %v1750 = vpow.pop %v1749
        %v1751 = vmul.f32 %v1654, 1.442695
        %v1752 = vpow.pop %v1751
        %v1753 = vmul.f32 %v1655, 1.442695
        %v1754 = vpow.pop %v1753
        %v1755 = vmul.f32 %v1656, 1.442695
        %v1756 = vpow.pop %v1755
        %v1757 = vmul.f32 %v1657, 1.442695
        %v1758 = vpow.pop %v1757
        %v1759 = vmul.f32 %v1658, 1.442695
        %v1760 = vpow.pop %v1759
        %v1761 = vmul.f32 %v1659, 1.442695
        %v1762 = vpow.pop %v1761
        %v1763 = vmul.f32 %v1660, 1.442695
        %v1764 = vpow.pop %v1763
        %v1765 = vmul.f32 %v1661, 1.442695
        %v1766 = vpow.pop %v1765
        %v1767 = vmul.f32 %v1662, 1.442695
        %v1768 = vpow.pop %v1767
        %v1769 = vmul.f32 %v1663, 1.442695
        %v1770 = vpow.pop %v1769
        %v1771 = vmul.f32 %v1664, 1.442695
        %v1772 = vpow.pop %v1771
        %v1773 = vmul.f32 %v1665, 1.442695
        %v1774 = vpow.pop %v1773
        %v1775 = vmul.f32 %v1666, 1.442695
        %v1776 = vpow.pop %v1775
        %v1777 = vmul.f32 %v1667, 1.442695
        %v1778 = vpow.pop %v1777
        %v1779 = vmul.f32 %v1668, 1.442695
        %v1780 = vpow.pop %v1779
        %v1781 = vmul.f32 %v1669, 1.442695
        %v1782 = vpow.pop %v1781
        %v1783 = vmul.f32 %v1670, 1.442695
        %v1784 = vpow.pop %v1783
        %v1785 = vmul.f32 %v1671, 1.442695
        %v1786 = vpow.pop %v1785
        %v1787 = vmul.f32 %v1672, 1.442695
        %v1788 = vpow.pop %v1787
        %v1789 = vmul.f32 %v1673, 1.442695
        %v1790 = vpow.pop %v1789
        %v1791 = vmul.f32 %v1674, 1.442695
        %v1792 = vpow.pop %v1791
        %v1793 = vmul.f32 %v1675, 1.442695
        %v1794 = vpow.pop %v1793
        %v1795 = vmul.f32 %v1676, 1.442695
        %v1796 = vpow.pop %v1795
        %v1797 = vmul.f32 %v1677, 1.442695
        %v1798 = vpow.pop %v1797
        %v1799 = vmul.f32 %v1678, 1.442695
        %v1800 = vpow.pop %v1799
        %v1801 = vmul.f32 %v1679, 1.442695
        %v1802 = vpow.pop %v1801
        %v1803 = vmul.f32 %v1680, 1.442695
        %v1804 = vpow.pop %v1803
        %v1805 = vmul.f32 %v1681, 1.442695
        %v1806 = vpow.pop %v1805
        %v1807 = vmul.f32 %v1682, 1.442695
        %v1808 = vpow.pop %v1807
        %v1809 = vmul.f32 %v1683, 1.442695
        %v1810 = vpow.pop %v1809
        %v1811 = vmul.f32 %v1684, 1.442695
        %v1812 = vpow.pop %v1811
        %v1813 = vadd.f32 %v1686, 1.0
        %v1814 = vadd.f32 %v1688, 1.0
        %v1815 = vadd.f32 %v1690, 1.0
        %v1816 = vadd.f32 %v1692, 1.0
        %v1817 = vadd.f32 %v1694, 1.0
        %v1818 = vadd.f32 %v1696, 1.0
        %v1819 = vadd.f32 %v1698, 1.0
        %v1820 = vadd.f32 %v1700, 1.0
        %v1821 = vadd.f32 %v1702, 1.0
        %v1822 = vadd.f32 %v1704, 1.0
        %v1823 = vadd.f32 %v1706, 1.0
        %v1824 = vadd.f32 %v1708, 1.0
        %v1825 = vadd.f32 %v1710, 1.0
        %v1826 = vadd.f32 %v1712, 1.0
        %v1827 = vadd.f32 %v1714, 1.0
        %v1828 = vadd.f32 %v1716, 1.0
        %v1829 = vadd.f32 %v1718, 1.0
        %v1830 = vadd.f32 %v1720, 1.0
        %v1831 = vadd.f32 %v1722, 1.0
        %v1832 = vadd.f32 %v1724, 1.0
        %v1833 = vadd.f32 %v1726, 1.0
        %v1834 = vadd.f32 %v1728, 1.0
        %v1835 = vadd.f32 %v1730, 1.0
        %v1836 = vadd.f32 %v1732, 1.0
        %v1837 = vadd.f32 %v1734, 1.0
        %v1838 = vadd.f32 %v1736, 1.0
        %v1839 = vadd.f32 %v1738, 1.0
        %v1840 = vadd.f32 %v1740, 1.0
        %v1841 = vadd.f32 %v1742, 1.0
        %v1842 = vadd.f32 %v1744, 1.0
        %v1843 = vadd.f32 %v1746, 1.0
        %v1844 = vadd.f32 %v1748, 1.0
        %v1845 = vadd.f32 %v1750, 1.0
        %v1846 = vadd.f32 %v1752, 1.0
        %v1847 = vadd.f32 %v1754, 1.0
        %v1848 = vadd.f32 %v1756, 1.0
        %v1849 = vadd.f32 %v1758, 1.0
        %v1850 = vadd.f32 %v1760, 1.0
        %v1851 = vadd.f32 %v1762, 1.0
        %v1852 = vadd.f32 %v1764, 1.0
        %v1853 = vadd.f32 %v1766, 1.0
        %v1854 = vadd.f32 %v1768, 1.0
        %v1855 = vadd.f32 %v1770, 1.0
        %v1856 = vadd.f32 %v1772, 1.0
        %v1857 = vadd.f32 %v1774, 1.0
        %v1858 = vadd.f32 %v1776, 1.0
        %v1859 = vadd.f32 %v1778, 1.0
        %v1860 = vadd.f32 %v1780, 1.0
        %v1861 = vadd.f32 %v1782, 1.0
        %v1862 = vadd.f32 %v1784, 1.0
        %v1863 = vadd.f32 %v1786, 1.0
        %v1864 = vadd.f32 %v1788, 1.0
        %v1865 = vadd.f32 %v1790, 1.0
        %v1866 = vadd.f32 %v1792, 1.0
        %v1867 = vadd.f32 %v1794, 1.0
        %v1868 = vadd.f32 %v1796, 1.0
        %v1869 = vadd.f32 %v1798, 1.0
        %v1870 = vadd.f32 %v1800, 1.0
        %v1871 = vadd.f32 %v1802, 1.0
        %v1872 = vadd.f32 %v1804, 1.0
        %v1873 = vadd.f32 %v1806, 1.0
        %v1874 = vadd.f32 %v1808, 1.0
        %v1875 = vadd.f32 %v1810, 1.0
        %v1876 = vadd.f32 %v1812, 1.0
        %v1877 = vrcp.pop %v1813
        %v1878 = vmul.f32 1.0, %v1877
        %v1879 = vrcp.pop %v1814
        %v1880 = vmul.f32 1.0, %v1879
        %v1881 = vrcp.pop %v1815
        %v1882 = vmul.f32 1.0, %v1881
        %v1883 = vrcp.pop %v1816
        %v1884 = vmul.f32 1.0, %v1883
        %v1885 = vrcp.pop %v1817
        %v1886 = vmul.f32 1.0, %v1885
        %v1887 = vrcp.pop %v1818
        %v1888 = vmul.f32 1.0, %v1887
        %v1889 = vrcp.pop %v1819
        %v1890 = vmul.f32 1.0, %v1889
        %v1891 = vrcp.pop %v1820
        %v1892 = vmul.f32 1.0, %v1891
        %v1893 = vrcp.pop %v1821
        %v1894 = vmul.f32 1.0, %v1893
        %v1895 = vrcp.pop %v1822
        %v1896 = vmul.f32 1.0, %v1895
        %v1897 = vrcp.pop %v1823
        %v1898 = vmul.f32 1.0, %v1897
        %v1899 = vrcp.pop %v1824
        %v1900 = vmul.f32 1.0, %v1899
        %v1901 = vrcp.pop %v1825
        %v1902 = vmul.f32 1.0, %v1901
        %v1903 = vrcp.pop %v1826
        %v1904 = vmul.f32 1.0, %v1903
        %v1905 = vrcp.pop %v1827
        %v1906 = vmul.f32 1.0, %v1905
        %v1907 = vrcp.pop %v1828
        %v1908 = vmul.f32 1.0, %v1907
        %v1909 = vrcp.pop %v1829
        %v1910 = vmul.f32 1.0, %v1909
        %v1911 = vrcp.pop %v1830
        %v1912 = vmul.f32 1.0, %v1911
        %v1913 = vrcp.pop %v1831
        %v1914 = vmul.f32 1.0, %v1913
        %v1915 = vrcp.pop %v1832
        %v1916 = vmul.f32 1.0, %v1915
        %v1917 = vrcp.pop %v1833
        %v1918 = vmul.f32 1.0, %v1917
        %v1919 = vrcp.pop %v1834
        %v1920 = vmul.f32 1.0, %v1919
        %v1921 = vrcp.pop %v1835
        %v1922 = vmul.f32 1.0, %v1921
        %v1923 = vrcp.pop %v1836
        %v1924 = vmul.f32 1.0, %v1923
        %v1925 = vrcp.pop %v1837
        %v1926 = vmul.f32 1.0, %v1925
        %v1927 = vrcp.pop %v1838
        %v1928 = vmul.f32 1.0, %v1927
        %v1929 = vrcp.pop %v1839
        %v1930 = vmul.f32 1.0, %v1929
        %v1931 = vrcp.pop %v1840
        %v1932 = vmul.f32 1.0, %v1931
        %v1933 = vrcp.pop %v1841
        %v1934 = vmul.f32 1.0, %v1933
        %v1935 = vrcp.pop %v1842
        %v1936 = vmul.f32 1.0, %v1935
        %v1937 = vrcp.pop %v1843
        %v1938 = vmul.f32 1.0, %v1937
        %v1939 = vrcp.pop %v1844
        %v1940 = vmul.f32 1.0, %v1939
        %v1941 = vrcp.pop %v1845
        %v1942 = vmul.f32 1.0, %v1941
        %v1943 = vrcp.pop %v1846
        %v1944 = vmul.f32 1.0, %v1943
        %v1945 = vrcp.pop %v1847
        %v1946 = vmul.f32 1.0, %v1945
        %v1947 = vrcp.pop %v1848
        %v1948 = vmul.f32 1.0, %v1947
        %v1949 = vrcp.pop %v1849
        %v1950 = vmul.f32 1.0, %v1949
        %v1951 = vrcp.pop %v1850
        %v1952 = vmul.f32 1.0, %v1951
        %v1953 = vrcp.pop %v1851
        %v1954 = vmul.f32 1.0, %v1953
        %v1955 = vrcp.pop %v1852
        %v1956 = vmul.f32 1.0, %v1955
        %v1957 = vrcp.pop %v1853
        %v1958 = vmul.f32 1.0, %v1957
        %v1959 = vrcp.pop %v1854
        %v1960 = vmul.f32 1.0, %v1959
        %v1961 = vrcp.pop %v1855
        %v1962 = vmul.f32 1.0, %v1961
        %v1963 = vrcp.pop %v1856
        %v1964 = vmul.f32 1.0, %v1963
        %v1965 = vrcp.pop %v1857
        %v1966 = vmul.f32 1.0, %v1965
        %v1967 = vrcp.pop %v1858
        %v1968 = vmul.f32 1.0, %v1967
        %v1969 = vrcp.pop %v1859
        %v1970 = vmul.f32 1.0, %v1969
        %v1971 = vrcp.pop %v1860
        %v1972 = vmul.f32 1.0, %v1971
        %v1973 = vrcp.pop %v1861
        %v1974 = vmul.f32 1.0, %v1973
        %v1975 = vrcp.pop %v1862
        %v1976 = vmul.f32 1.0, %v1975
        %v1977 = vrcp.pop %v1863
        %v1978 = vmul.f32 1.0, %v1977
        %v1979 = vrcp.pop %v1864
        %v1980 = vmul.f32 1.0, %v1979
        %v1981 = vrcp.pop %v1865
        %v1982 = vmul.f32 1.0, %v1981
        %v1983 = vrcp.pop %v1866
        %v1984 = vmul.f32 1.0, %v1983
        %v1985 = vrcp.pop %v1867
        %v1986 = vmul.f32 1.0, %v1985
        %v1987 = vrcp.pop %v1868
        %v1988 = vmul.f32 1.0, %v1987
        %v1989 = vrcp.pop %v1869
        %v1990 = vmul.f32 1.0, %v1989
        %v1991 = vrcp.pop %v1870
        %v1992 = vmul.f32 1.0, %v1991
        %v1993 = vrcp.pop %v1871
        %v1994 = vmul.f32 1.0, %v1993
        %v1995 = vrcp.pop %v1872
        %v1996 = vmul.f32 1.0, %v1995
        %v1997 = vrcp.pop %v1873
        %v1998 = vmul.f32 1.0, %v1997
        %v1999 = vrcp.pop %v1874
        %v2000 = vmul.f32 1.0, %v1999
        %v2001 = vrcp.pop %v1875
        %v2002 = vmul.f32 1.0, %v2001
        %v2003 = vrcp.pop %v1876
        %v2004 = vmul.f32 1.0, %v2003
        %vm2005 = vcmask 523264
        %v2006 = vsel %vm2005, %v1878, 0.0
        %v2007 = vsel %vm2005, %v1880, 0.0
        %v2008 = vadd.f32 %v2006, %v2007
        %v2009 = vsel %vm2005, %v1882, 0.0
        %v2010 = vadd.f32 %v2008, %v2009
        %v2011 = vsel %vm2005, %v1884, 0.0
        %v2012 = vadd.f32 %v2010, %v2011
        %v2013 = vsel %vm2005, %v1886, 0.0
        %v2014 = vadd.f32 %v2012, %v2013
        %v2015 = vsel %vm2005, %v1888, 0.0
        %v2016 = vadd.f32 %v2014, %v2015
        %v2017 = vsel %vm2005, %v1890, 0.0
        %v2018 = vadd.f32 %v2016, %v2017
        %v2019 = vsel %vm2005, %v1892, 0.0
        %v2020 = vadd.f32 %v2018, %v2019
        %v2021 = vsel %vm2005, %v1894, 0.0
        %v2022 = vadd.f32 %v2020, %v2021
        %v2023 = vsel %vm2005, %v1896, 0.0
        %v2024 = vadd.f32 %v2022, %v2023
        %v2025 = vsel %vm2005, %v1898, 0.0
        %v2026 = vadd.f32 %v2024, %v2025
        %v2027 = vsel %vm2005, %v1900, 0.0
        %v2028 = vadd.f32 %v2026, %v2027
        %v2029 = vsel %vm2005, %v1902, 0.0
        %v2030 = vadd.f32 %v2028, %v2029
        %v2031 = vsel %vm2005, %v1904, 0.0
        %v2032 = vadd.f32 %v2030, %v2031
        %v2033 = vsel %vm2005, %v1906, 0.0
        %v2034 = vadd.f32 %v2032, %v2033
        %v2035 = vsel %vm2005, %v1908, 0.0
        %v2036 = vadd.f32 %v2034, %v2035
        %v2037 = vsel %vm2005, %v1910, 0.0
        %v2038 = vadd.f32 %v2036, %v2037
        %v2039 = vsel %vm2005, %v1912, 0.0
        %v2040 = vadd.f32 %v2038, %v2039
        %v2041 = vsel %vm2005, %v1914, 0.0
        %v2042 = vadd.f32 %v2040, %v2041
        %v2043 = vsel %vm2005, %v1916, 0.0
        %v2044 = vadd.f32 %v2042, %v2043
        %v2045 = vsel %vm2005, %v1918, 0.0
        %v2046 = vadd.f32 %v2044, %v2045
        %v2047 = vsel %vm2005, %v1920, 0.0
        %v2048 = vadd.f32 %v2046, %v2047
        %v2049 = vsel %vm2005, %v1922, 0.0
        %v2050 = vadd.f32 %v2048, %v2049
        %v2051 = vsel %vm2005, %v1924, 0.0
        %v2052 = vadd.f32 %v2050, %v2051
        %v2053 = vsel %vm2005, %v1926, 0.0
        %v2054 = vadd.f32 %v2052, %v2053
        %v2055 = vsel %vm2005, %v1928, 0.0
        %v2056 = vadd.f32 %v2054, %v2055
        %v2057 = vsel %vm2005, %v1930, 0.0
        %v2058 = vadd.f32 %v2056, %v2057
        %v2059 = vsel %vm2005, %v1932, 0.0
        %v2060 = vadd.f32 %v2058, %v2059
        %v2061 = vsel %vm2005, %v1934, 0.0
        %v2062 = vadd.f32 %v2060, %v2061
        %v2063 = vsel %vm2005, %v1936, 0.0
        %v2064 = vadd.f32 %v2062, %v2063
        %v2065 = vsel %vm2005, %v1938, 0.0
        %v2066 = vadd.f32 %v2064, %v2065
        %v2067 = vsel %vm2005, %v1940, 0.0
        %v2068 = vadd.f32 %v2066, %v2067
        %v2069 = vrot.slane %v2068, 4
        %v2070 = vadd.f32 %v2068, %v2069
        %v2071 = vrot.slane %v2070, 2
        %v2072 = vadd.f32 %v2070, %v2071
        %v2073 = vrot.slane %v2072, 1
        %v2074 = vadd.f32 %v2072, %v2073
        %v2075 = vsel %vm2005, %v1942, 0.0
        %v2076 = vsel %vm2005, %v1944, 0.0
        %v2077 = vadd.f32 %v2075, %v2076
        %v2078 = vsel %vm2005, %v1946, 0.0
        %v2079 = vadd.f32 %v2077, %v2078
        %v2080 = vsel %vm2005, %v1948, 0.0
        %v2081 = vadd.f32 %v2079, %v2080
        %v2082 = vsel %vm2005, %v1950, 0.0
        %v2083 = vadd.f32 %v2081, %v2082
        %v2084 = vsel %vm2005, %v1952, 0.0
        %v2085 = vadd.f32 %v2083, %v2084
        %v2086 = vsel %vm2005, %v1954, 0.0
        %v2087 = vadd.f32 %v2085, %v2086
        %v2088 = vsel %vm2005, %v1956, 0.0
        %v2089 = vadd.f32 %v2087, %v2088
        %v2090 = vsel %vm2005, %v1958, 0.0
        %v2091 = vadd.f32 %v2089, %v2090
        %v2092 = vsel %vm2005, %v1960, 0.0
        %v2093 = vadd.f32 %v2091, %v2092
        %v2094 = vsel %vm2005, %v1962, 0.0
        %v2095 = vadd.f32 %v2093, %v2094
        %v2096 = vsel %vm2005, %v1964, 0.0
        %v2097 = vadd.f32 %v2095, %v2096
        %v2098 = vsel %vm2005, %v1966, 0.0
        %v2099 = vadd.f32 %v2097, %v2098
        %v2100 = vsel %vm2005, %v1968, 0.0
        %v2101 = vadd.f32 %v2099, %v2100
        %v2102 = vsel %vm2005, %v1970, 0.0
        %v2103 = vadd.f32 %v2101, %v2102
        %v2104 = vsel %vm2005, %v1972, 0.0
        %v2105 = vadd.f32 %v2103, %v2104
        %v2106 = vsel %vm2005, %v1974, 0.0
        %v2107 = vadd.f32 %v2105, %v2106
        %v2108 = vsel %vm2005, %v1976, 0.0
        %v2109 = vadd.f32 %v2107, %v2108
        %v2110 = vsel %vm2005, %v1978, 0.0
        %v2111 = vadd.f32 %v2109, %v2110
        %v2112 = vsel %vm2005, %v1980, 0.0
        %v2113 = vadd.f32 %v2111, %v2112
        %v2114 = vsel %vm2005, %v1982, 0.0
        %v2115 = vadd.f32 %v2113, %v2114
        %v2116 = vsel %vm2005, %v1984, 0.0
        %v2117 = vadd.f32 %v2115, %v2116
        %v2118 = vsel %vm2005, %v1986, 0.0
        %v2119 = vadd.f32 %v2117, %v2118
        %v2120 = vsel %vm2005, %v1988, 0.0
        %v2121 = vadd.f32 %v2119, %v2120
        %v2122 = vsel %vm2005, %v1990, 0.0
        %v2123 = vadd.f32 %v2121, %v2122
        %v2124 = vsel %vm2005, %v1992, 0.0
        %v2125 = vadd.f32 %v2123, %v2124
        %v2126 = vsel %vm2005, %v1994, 0.0
        %v2127 = vadd.f32 %v2125, %v2126
        %v2128 = vsel %vm2005, %v1996, 0.0
        %v2129 = vadd.f32 %v2127, %v2128
        %v2130 = vsel %vm2005, %v1998, 0.0
        %v2131 = vadd.f32 %v2129, %v2130
        %v2132 = vsel %vm2005, %v2000, 0.0
        %v2133 = vadd.f32 %v2131, %v2132
        %v2134 = vsel %vm2005, %v2002, 0.0
        %v2135 = vadd.f32 %v2133, %v2134
        %v2136 = vsel %vm2005, %v2004, 0.0
        %v2137 = vadd.f32 %v2135, %v2136
        %v2138 = vrot.slane %v2137, 4
        %v2139 = vadd.f32 %v2137, %v2138
        %v2140 = vrot.slane %v2139, 2
        %v2141 = vadd.f32 %v2139, %v2140
        %v2142 = vrot.slane %v2141, 1
        %v2143 = vadd.f32 %v2141, %v2142
        %v2144 = vrcp.pop 256.0
        %v2145 = vmul.f32 %v2074, %v2144
        %v2146 = vmul.f32 %v2143, %v2144
        %v2147 = vpack.c.bf16 %v2145, %v2145
        %v2148 = vpack.c.bf16 %v2146, %v2146
        %v2149 = vld [vmem:[#allocation11] sm:$0xff]
        %v2150 = vld [vmem:[#allocation11 + $0x8] sm:$0xff]
        %v2151 = vld [vmem:[#allocation11 + $0x10] sm:$0xff]
        %v2152 = vld [vmem:[#allocation11 + $0x18] sm:$0xff]
        %v2153 = vld [vmem:[#allocation11 + $0x20] sm:$0xff]
        %v2154 = vld [vmem:[#allocation11 + $0x28] sm:$0xff]
        %v2155 = vld [vmem:[#allocation11 + $0x30] sm:$0xff]
        %v2156 = vld [vmem:[#allocation11 + $0x38] sm:$0xff]
        %v2157 = vld [vmem:[#allocation11 + $0x40] sm:$0xff]
        %v2158 = vld [vmem:[#allocation11 + $0x48] sm:$0xff]
        %v2159 = vld [vmem:[#allocation11 + $0x50] sm:$0xff]
        %v2160 = vld [vmem:[#allocation11 + $0x58] sm:$0xff]
        %v2161 = vld [vmem:[#allocation11 + $0x60] sm:$0xff]
        %v2162 = vld [vmem:[#allocation11 + $0x68] sm:$0xff]
        %v2163 = vld [vmem:[#allocation11 + $0x70] sm:$0xff]
        %v2164 = vld [vmem:[#allocation11 + $0x78] sm:$0xff]
        %v2165 = vld [vmem:[#allocation13] sm:$0xf]
        %v2167 = vlaneseq
        %v2168 = vshrl.u32 %v2167, 7
        %v2169 = vsub.s32 0, %v2168
        %v2170 = vrot.slane %v2165, %v2169
        %v2171 = vlaneseq
        %v2172 = vshrl.u32 %v2171, 7
        %v2173 = vsub.s32 1, %v2172
        %v2174 = vrot.slane %v2165, %v2173
        %v2175 = vlaneseq
        %v2176 = vshrl.u32 %v2175, 7
        %v2177 = vsub.s32 2, %v2176
        %v2178 = vrot.slane %v2165, %v2177
        %v2179 = vlaneseq
        %v2180 = vshrl.u32 %v2179, 7
        %v2181 = vsub.s32 3, %v2180
        %v2182 = vrot.slane %v2165, %v2181
        %v2189 = vunpack.c.l.b16 %v2147
        %v2190 = vunpack.c.l.b16 %v2148
        %vm2191 = vcmask 1041409
        %v2192 = vsel %vm2191, %v2190, %v2189
        %v2193 = vpack.c.b16 %v2192, %v2192
        %v2210 = vunpack.c.l.b16 %v2149
        %v2211 = vunpack.c.h.b16 %v2149
        %v2212 = vunpack.c.l.b16 %v2150
        %v2213 = vunpack.c.h.b16 %v2150
        %v2214 = vunpack.c.l.b16 %v2151
        %v2215 = vunpack.c.h.b16 %v2151
        %v2216 = vunpack.c.l.b16 %v2152
        %v2217 = vunpack.c.h.b16 %v2152
        %v2218 = vunpack.c.l.b16 %v2153
        %v2219 = vunpack.c.h.b16 %v2153
        %v2220 = vunpack.c.l.b16 %v2154
        %v2221 = vunpack.c.h.b16 %v2154
        %v2222 = vunpack.c.l.b16 %v2155
        %v2223 = vunpack.c.h.b16 %v2155
        %v2224 = vunpack.c.l.b16 %v2156
        %v2225 = vunpack.c.h.b16 %v2156
        %v2226 = vunpack.c.l.b16 %v2157
        %v2227 = vunpack.c.h.b16 %v2157
        %v2228 = vunpack.c.l.b16 %v2158
        %v2229 = vunpack.c.h.b16 %v2158
        %v2230 = vunpack.c.l.b16 %v2159
        %v2231 = vunpack.c.h.b16 %v2159
        %v2232 = vunpack.c.l.b16 %v2160
        %v2233 = vunpack.c.h.b16 %v2160
        %v2234 = vunpack.c.l.b16 %v2161
        %v2235 = vunpack.c.h.b16 %v2161
        %v2236 = vunpack.c.l.b16 %v2162
        %v2237 = vunpack.c.h.b16 %v2162
        %v2238 = vunpack.c.l.b16 %v2163
        %v2239 = vunpack.c.h.b16 %v2163
        %v2240 = vunpack.c.l.b16 %v2164
        %v2241 = vunpack.c.h.b16 %v2164
        %v2242 = vpack.c.b16 %v2214, %v2210
        %v2243 = vpack.c.b16 %v2215, %v2211
        %v2244 = vpack.c.b16 %v2216, %v2212
        %v2245 = vpack.c.b16 %v2217, %v2213
        %v2246 = vpack.c.b16 %v2222, %v2218
        %v2247 = vpack.c.b16 %v2223, %v2219
        %v2248 = vpack.c.b16 %v2224, %v2220
        %v2249 = vpack.c.b16 %v2225, %v2221
        %v2250 = vpack.c.b16 %v2230, %v2226
        %v2251 = vpack.c.b16 %v2231, %v2227
        %v2252 = vpack.c.b16 %v2232, %v2228
        %v2253 = vpack.c.b16 %v2233, %v2229
        %v2254 = vpack.c.b16 %v2238, %v2234
        %v2255 = vpack.c.b16 %v2239, %v2235
        %v2256 = vpack.c.b16 %v2240, %v2236
        %v2257 = vpack.c.b16 %v2241, %v2237
        %v2275 = vsel %vm2005, %v2193, 0
        %2277 = vmatprep.subr.bf16.mxu0 %v2243
        %2278 = vmatpush1.bf16.msra.mxu0 %v2242
        %2279 = vmatprep.subr.bf16.mxu0 %v2247
        %2280 = vmatpush1.bf16.msra.mxu0 %v2246
        %2281 = vmatprep.subr.bf16.mxu0 %v2251
        %2282 = vmatpush1.bf16.msra.mxu0 %v2250
        %2283 = vmatprep.subr.bf16.mxu0 %v2255
        %2284 = vmatpush1.bf16.msra.mxu0 %v2254
        %2285 = vmatprep.subr.bf16.mxu0 0
        %2286 = vmatpush1.bf16.msra.mxu0 0
        %2287 = vmatprep.subr.bf16.mxu0 0
        %2288 = vmatpush1.bf16.msra.mxu0 0
        %2289 = vmatprep.subr.bf16.mxu0 0
        %2290 = vmatpush1.bf16.msra.mxu0 0
        %2291 = vmatprep.subr.bf16.mxu0 0
        %2292 = vmatpush1.bf16.msra.mxu0 0
        %2293 = vmatprep.subr.bf16.mxu0 0
        %2294 = vmatpush1.bf16.msra.mxu0 0
        %2295 = vmatprep.subr.bf16.mxu0 0
        %2296 = vmatpush1.bf16.msra.mxu0 0
        %2297 = vmatprep.subr.bf16.mxu0 0
        %2298 = vmatpush1.bf16.msra.mxu0 0
        %2299 = vmatprep.subr.bf16.mxu0 0
        %2300 = vmatpush1.bf16.msra.mxu0 0
        %2301 = vmatprep.subr.bf16.mxu0 0
        %2302 = vmatpush1.bf16.msra.mxu0 0
        %2303 = vmatprep.subr.bf16.mxu0 0
        %2304 = vmatpush1.bf16.msra.mxu0 0
        %2305 = vmatprep.subr.bf16.mxu0 0
        %2306 = vmatpush1.bf16.msra.mxu0 0
        %2307 = vmatprep.subr.bf16.mxu0 0
        %2308 = vmatpush1.bf16.msra.mxu0 0
        %2309 = vmatprep.mubr.bf16.mxu0 0
        %2310 = vmatmul.mubr.bf16.gmra.mrb[0].mxu0 %v2275
        %v2311 = vpop.f32.mrb[0].mxu0
        %v2312 = vadd.f32 %v2170, %v2311
        %v2313 = vpop.f32.mrb[0].mxu0
        %v2314 = vadd.f32 %v2174, %v2313
        %v2315 = vpop.f32.mrb[0].mxu0
        %v2316 = vpop.f32.mrb[0].mxu0
        %2317 = vdwg.mxu0
        %2318 = vmatprep.subr.bf16.mxu0 %v2245
        %2319 = vmatpush1.bf16.msra.mxu0 %v2244
        %2320 = vmatprep.subr.bf16.mxu0 %v2249
        %2321 = vmatpush1.bf16.msra.mxu0 %v2248
        %2322 = vmatprep.subr.bf16.mxu0 %v2253
        %2323 = vmatpush1.bf16.msra.mxu0 %v2252
        %2324 = vmatprep.subr.bf16.mxu0 %v2257
        %2325 = vmatpush1.bf16.msra.mxu0 %v2256
        %2326 = vmatprep.subr.bf16.mxu0 0
        %2327 = vmatpush1.bf16.msra.mxu0 0
        %2328 = vmatprep.subr.bf16.mxu0 0
        %2329 = vmatpush1.bf16.msra.mxu0 0
        %2330 = vmatprep.subr.bf16.mxu0 0
        %2331 = vmatpush1.bf16.msra.mxu0 0
        %2332 = vmatprep.subr.bf16.mxu0 0
        %2333 = vmatpush1.bf16.msra.mxu0 0
        %2334 = vmatprep.subr.bf16.mxu0 0
        %2335 = vmatpush1.bf16.msra.mxu0 0
        %2336 = vmatprep.subr.bf16.mxu0 0
        %2337 = vmatpush1.bf16.msra.mxu0 0
        %2338 = vmatprep.subr.bf16.mxu0 0
        %2339 = vmatpush1.bf16.msra.mxu0 0
        %2340 = vmatprep.subr.bf16.mxu0 0
        %2341 = vmatpush1.bf16.msra.mxu0 0
        %2342 = vmatprep.subr.bf16.mxu0 0
        %2343 = vmatpush1.bf16.msra.mxu0 0
        %2344 = vmatprep.subr.bf16.mxu0 0
        %2345 = vmatpush1.bf16.msra.mxu0 0
        %2346 = vmatprep.subr.bf16.mxu0 0
        %2347 = vmatpush1.bf16.msra.mxu0 0
        %2348 = vmatprep.subr.bf16.mxu0 0
        %2349 = vmatpush1.bf16.msra.mxu0 0
        %2350 = vmatprep.mubr.bf16.mxu0 0
        %2351 = vmatmul.mubr.bf16.gmra.mrb[0].mxu0 %v2275
        %v2352 = vpop.f32.mrb[0].mxu0
        %v2353 = vadd.f32 %v2178, %v2352
        %v2354 = vpop.f32.mrb[0].mxu0
        %v2355 = vadd.f32 %v2182, %v2354
        %v2356 = vpop.f32.mrb[0].mxu0
        %v2357 = vpop.f32.mrb[0].mxu0
        %2358 = vdwg.mxu0
        %vm2359 = vcmp.gt.f32.partialorder %v2312, 0.0
        %vm2360 = vcmp.gt.f32.partialorder %v2314, 0.0
        %vm2361 = vcmp.gt.f32.partialorder %v2353, 0.0
        %vm2362 = vcmp.gt.f32.partialorder %v2355, 0.0
        %v2363 = vmin.f32 %v2312, 0.0
        %v2364 = vmin.f32 %v2314, 0.0
        %v2365 = vmin.f32 %v2353, 0.0
        %v2366 = vmin.f32 %v2355, 0.0
        %v2367 = vmul.f32 %v2363, 1.442695
        %v2368 = vpow.pop %v2367
        %v2369 = vmul.f32 %v2364, 1.442695
        %v2370 = vpow.pop %v2369
        %v2371 = vmul.f32 %v2365, 1.442695
        %v2372 = vpow.pop %v2371
        %v2373 = vmul.f32 %v2366, 1.442695
        %v2374 = vpow.pop %v2373
        %v2375 = vsub.f32 %v2368, 1.0
        %v2376 = vsub.f32 %v2370, 1.0
        %v2377 = vsub.f32 %v2372, 1.0
        %v2378 = vsub.f32 %v2374, 1.0
        %v2379 = vsel %vm2359, %v2312, %v2375
        %v2380 = vsel %vm2360, %v2314, %v2376
        %v2381 = vsel %vm2361, %v2353, %v2377
        %v2382 = vsel %vm2362, %v2355, %v2378
        %v2383 = vpack.c.bf16 %v2379, %v2379
        %v2384 = vpack.c.bf16 %v2380, %v2380
        %v2385 = vpack.c.bf16 %v2381, %v2381
        %v2386 = vpack.c.bf16 %v2382, %v2382
        %v2387 = vld [vmem:[#allocation14] sm:$0xf]
        %v2388 = vld [vmem:[#allocation14 + $0x4] sm:$0xf]
        %v2389 = vld [vmem:[#allocation14 + $0x8] sm:$0xf]
        %v2390 = vld [vmem:[#allocation14 + $0xc] sm:$0xf]
        %v2391 = vld [vmem:[#allocation14 + $0x10] sm:$0xf]
        %v2392 = vld [vmem:[#allocation14 + $0x14] sm:$0xf]
        %v2393 = vld [vmem:[#allocation14 + $0x18] sm:$0xf]
        %v2394 = vld [vmem:[#allocation14 + $0x1c] sm:$0xf]
        %v2395 = vld [vmem:[#allocation14 + $0x20] sm:$0xf]
        %v2396 = vld [vmem:[#allocation14 + $0x24] sm:$0xf]
        %v2397 = vld [vmem:[#allocation14 + $0x28] sm:$0xf]
        %v2398 = vld [vmem:[#allocation14 + $0x2c] sm:$0xf]
        %v2399 = vld [vmem:[#allocation14 + $0x30] sm:$0xf]
        %v2400 = vld [vmem:[#allocation14 + $0x34] sm:$0xf]
        %v2401 = vld [vmem:[#allocation14 + $0x38] sm:$0xf]
        %v2402 = vld [vmem:[#allocation14 + $0x3c] sm:$0xf]
        %v2403 = vld [vmem:[#allocation14 + $0x40] sm:$0xf]
        %v2404 = vld [vmem:[#allocation14 + $0x44] sm:$0xf]
        %v2405 = vld [vmem:[#allocation14 + $0x48] sm:$0xf]
        %v2406 = vld [vmem:[#allocation14 + $0x4c] sm:$0xf]
        %v2407 = vld [vmem:[#allocation14 + $0x50] sm:$0xf]
        %v2408 = vld [vmem:[#allocation14 + $0x54] sm:$0xf]
        %v2409 = vld [vmem:[#allocation14 + $0x58] sm:$0xf]
        %v2410 = vld [vmem:[#allocation14 + $0x5c] sm:$0xf]
        %v2411 = vld [vmem:[#allocation14 + $0x60] sm:$0xf]
        %v2412 = vld [vmem:[#allocation14 + $0x64] sm:$0xf]
        %v2413 = vld [vmem:[#allocation14 + $0x68] sm:$0xf]
        %v2414 = vld [vmem:[#allocation14 + $0x6c] sm:$0xf]
        %v2415 = vld [vmem:[#allocation14 + $0x70] sm:$0xf]
        %v2416 = vld [vmem:[#allocation14 + $0x74] sm:$0xf]
        %v2417 = vld [vmem:[#allocation14 + $0x78] sm:$0xf]
        %v2418 = vld [vmem:[#allocation14 + $0x7c] sm:$0xf]
        %v2419 = vld [vmem:[#allocation14 + $0x80] sm:$0xf]
        %v2420 = vld [vmem:[#allocation14 + $0x84] sm:$0xf]
        %v2421 = vld [vmem:[#allocation14 + $0x88] sm:$0xf]
        %v2422 = vld [vmem:[#allocation14 + $0x8c] sm:$0xf]
        %v2423 = vld [vmem:[#allocation14 + $0x90] sm:$0xf]
        %v2424 = vld [vmem:[#allocation14 + $0x94] sm:$0xf]
        %v2425 = vld [vmem:[#allocation14 + $0x98] sm:$0xf]
        %v2426 = vld [vmem:[#allocation14 + $0x9c] sm:$0xf]
        %v2427 = vld [vmem:[#allocation14 + $0xa0] sm:$0xf]
        %v2428 = vld [vmem:[#allocation14 + $0xa4] sm:$0xf]
        %v2429 = vld [vmem:[#allocation14 + $0xa8] sm:$0xf]
        %v2430 = vld [vmem:[#allocation14 + $0xac] sm:$0xf]
        %v2431 = vld [vmem:[#allocation14 + $0xb0] sm:$0xf]
        %v2432 = vld [vmem:[#allocation14 + $0xb4] sm:$0xf]
        %v2433 = vld [vmem:[#allocation14 + $0xb8] sm:$0xf]
        %v2434 = vld [vmem:[#allocation14 + $0xbc] sm:$0xf]
        %v2435 = vld [vmem:[#allocation14 + $0xc0] sm:$0xf]
        %v2436 = vld [vmem:[#allocation14 + $0xc4] sm:$0xf]
        %v2437 = vld [vmem:[#allocation14 + $0xc8] sm:$0xf]
        %v2438 = vld [vmem:[#allocation14 + $0xcc] sm:$0xf]
        %v2439 = vld [vmem:[#allocation14 + $0xd0] sm:$0xf]
        %v2440 = vld [vmem:[#allocation14 + $0xd4] sm:$0xf]
        %v2441 = vld [vmem:[#allocation14 + $0xd8] sm:$0xf]
        %v2442 = vld [vmem:[#allocation14 + $0xdc] sm:$0xf]
        %v2443 = vld [vmem:[#allocation14 + $0xe0] sm:$0xf]
        %v2444 = vld [vmem:[#allocation14 + $0xe4] sm:$0xf]
        %v2445 = vld [vmem:[#allocation14 + $0xe8] sm:$0xf]
        %v2446 = vld [vmem:[#allocation14 + $0xec] sm:$0xf]
        %v2447 = vld [vmem:[#allocation14 + $0xf0] sm:$0xf]
        %v2448 = vld [vmem:[#allocation14 + $0xf4] sm:$0xf]
        %v2449 = vld [vmem:[#allocation14 + $0xf8] sm:$0xf]
        %v2450 = vld [vmem:[#allocation14 + $0xfc] sm:$0xf]
        %v2451 = vld [vmem:[#allocation16] sm:$0x1]
        %v2453 = vlaneseq
        %v2454 = vshrl.u32 %v2453, 7
        %v2455 = vsub.s32 0, %v2454
        %v2456 = vrot.slane %v2451, %v2455
        %v2522 = vunpack.c.l.b16 %v2387
        %v2523 = vunpack.c.l.b16 %v2388
        %v2524 = vunpack.c.l.b16 %v2389
        %v2525 = vunpack.c.l.b16 %v2390
        %v2526 = vunpack.c.l.b16 %v2391
        %v2527 = vunpack.c.l.b16 %v2392
        %v2528 = vunpack.c.l.b16 %v2393
        %v2529 = vunpack.c.l.b16 %v2394
        %v2530 = vunpack.c.l.b16 %v2395
        %v2531 = vunpack.c.l.b16 %v2396
        %v2532 = vunpack.c.l.b16 %v2397
        %v2533 = vunpack.c.l.b16 %v2398
        %v2534 = vunpack.c.l.b16 %v2399
        %v2535 = vunpack.c.l.b16 %v2400
        %v2536 = vunpack.c.l.b16 %v2401
        %v2537 = vunpack.c.l.b16 %v2402
        %v2538 = vunpack.c.l.b16 %v2403
        %v2539 = vunpack.c.l.b16 %v2404
        %v2540 = vunpack.c.l.b16 %v2405
        %v2541 = vunpack.c.l.b16 %v2406
        %v2542 = vunpack.c.l.b16 %v2407
        %v2543 = vunpack.c.l.b16 %v2408
        %v2544 = vunpack.c.l.b16 %v2409
        %v2545 = vunpack.c.l.b16 %v2410
        %v2546 = vunpack.c.l.b16 %v2411
        %v2547 = vunpack.c.l.b16 %v2412
        %v2548 = vunpack.c.l.b16 %v2413
        %v2549 = vunpack.c.l.b16 %v2414
        %v2550 = vunpack.c.l.b16 %v2415
        %v2551 = vunpack.c.l.b16 %v2416
        %v2552 = vunpack.c.l.b16 %v2417
        %v2553 = vunpack.c.l.b16 %v2418
        %v2554 = vunpack.c.l.b16 %v2419
        %v2555 = vunpack.c.l.b16 %v2420
        %v2556 = vunpack.c.l.b16 %v2421
        %v2557 = vunpack.c.l.b16 %v2422
        %v2558 = vunpack.c.l.b16 %v2423
        %v2559 = vunpack.c.l.b16 %v2424
        %v2560 = vunpack.c.l.b16 %v2425
        %v2561 = vunpack.c.l.b16 %v2426
        %v2562 = vunpack.c.l.b16 %v2427
        %v2563 = vunpack.c.l.b16 %v2428
        %v2564 = vunpack.c.l.b16 %v2429
        %v2565 = vunpack.c.l.b16 %v2430
        %v2566 = vunpack.c.l.b16 %v2431
        %v2567 = vunpack.c.l.b16 %v2432
        %v2568 = vunpack.c.l.b16 %v2433
        %v2569 = vunpack.c.l.b16 %v2434
        %v2570 = vunpack.c.l.b16 %v2435
        %v2571 = vunpack.c.l.b16 %v2436
        %v2572 = vunpack.c.l.b16 %v2437
        %v2573 = vunpack.c.l.b16 %v2438
        %v2574 = vunpack.c.l.b16 %v2439
        %v2575 = vunpack.c.l.b16 %v2440
        %v2576 = vunpack.c.l.b16 %v2441
        %v2577 = vunpack.c.l.b16 %v2442
        %v2578 = vunpack.c.l.b16 %v2443
        %v2579 = vunpack.c.l.b16 %v2444
        %v2580 = vunpack.c.l.b16 %v2445
        %v2581 = vunpack.c.l.b16 %v2446
        %v2582 = vunpack.c.l.b16 %v2447
        %v2583 = vunpack.c.l.b16 %v2448
        %v2584 = vunpack.c.l.b16 %v2449
        %v2585 = vunpack.c.l.b16 %v2450
        %v2586 = vpack.c.b16 %v2523, %v2522
        %v2587 = vpack.c.b16 %v2525, %v2524
        %v2588 = vpack.c.b16 %v2527, %v2526
        %v2589 = vpack.c.b16 %v2529, %v2528
        %v2590 = vpack.c.b16 %v2531, %v2530
        %v2591 = vpack.c.b16 %v2533, %v2532
        %v2592 = vpack.c.b16 %v2535, %v2534
        %v2593 = vpack.c.b16 %v2537, %v2536
        %v2594 = vpack.c.b16 %v2539, %v2538
        %v2595 = vpack.c.b16 %v2541, %v2540
        %v2596 = vpack.c.b16 %v2543, %v2542
        %v2597 = vpack.c.b16 %v2545, %v2544
        %v2598 = vpack.c.b16 %v2547, %v2546
        %v2599 = vpack.c.b16 %v2549, %v2548
        %v2600 = vpack.c.b16 %v2551, %v2550
        %v2601 = vpack.c.b16 %v2553, %v2552
        %v2602 = vpack.c.b16 %v2555, %v2554
        %v2603 = vpack.c.b16 %v2557, %v2556
        %v2604 = vpack.c.b16 %v2559, %v2558
        %v2605 = vpack.c.b16 %v2561, %v2560
        %v2606 = vpack.c.b16 %v2563, %v2562
        %v2607 = vpack.c.b16 %v2565, %v2564
        %v2608 = vpack.c.b16 %v2567, %v2566
        %v2609 = vpack.c.b16 %v2569, %v2568
        %v2610 = vpack.c.b16 %v2571, %v2570
        %v2611 = vpack.c.b16 %v2573, %v2572
        %v2612 = vpack.c.b16 %v2575, %v2574
        %v2613 = vpack.c.b16 %v2577, %v2576
        %v2614 = vpack.c.b16 %v2579, %v2578
        %v2615 = vpack.c.b16 %v2581, %v2580
        %v2616 = vpack.c.b16 %v2583, %v2582
        %v2617 = vpack.c.b16 %v2585, %v2584
        %2650 = vmatprep.subr.bf16.mxu0 0
        %2651 = vmatpush1.bf16.msra.mxu0 %v2586
        %2652 = vmatprep.subr.bf16.mxu0 0
        %2653 = vmatpush1.bf16.msra.mxu0 %v2587
        %2654 = vmatprep.subr.bf16.mxu0 0
        %2655 = vmatpush1.bf16.msra.mxu0 %v2588
        %2656 = vmatprep.subr.bf16.mxu0 0
        %2657 = vmatpush1.bf16.msra.mxu0 %v2589
        %2658 = vmatprep.subr.bf16.mxu0 0
        %2659 = vmatpush1.bf16.msra.mxu0 %v2590
        %2660 = vmatprep.subr.bf16.mxu0 0
        %2661 = vmatpush1.bf16.msra.mxu0 %v2591
        %2662 = vmatprep.subr.bf16.mxu0 0
        %2663 = vmatpush1.bf16.msra.mxu0 %v2592
        %2664 = vmatprep.subr.bf16.mxu0 0
        %2665 = vmatpush1.bf16.msra.mxu0 %v2593
        %2666 = vmatprep.subr.bf16.mxu0 0
        %2667 = vmatpush1.bf16.msra.mxu0 %v2594
        %2668 = vmatprep.subr.bf16.mxu0 0
        %2669 = vmatpush1.bf16.msra.mxu0 %v2595
        %2670 = vmatprep.subr.bf16.mxu0 0
        %2671 = vmatpush1.bf16.msra.mxu0 %v2596
        %2672 = vmatprep.subr.bf16.mxu0 0
        %2673 = vmatpush1.bf16.msra.mxu0 %v2597
        %2674 = vmatprep.subr.bf16.mxu0 0
        %2675 = vmatpush1.bf16.msra.mxu0 %v2598
        %2676 = vmatprep.subr.bf16.mxu0 0
        %2677 = vmatpush1.bf16.msra.mxu0 %v2599
        %2678 = vmatprep.subr.bf16.mxu0 0
        %2679 = vmatpush1.bf16.msra.mxu0 %v2600
        %2680 = vmatprep.subr.bf16.mxu0 0
        %2681 = vmatpush1.bf16.msra.mxu0 %v2601
        %2682 = vmatprep.mubr.bf16.mxu0 %v2384
        %2683 = vmatmul.mubr.bf16.gmra.mrb[0].mxu0 %v2383
        %v2684 = vpop.f32.mrb[0].mxu0
        %v2685 = vadd.f32 %v2456, %v2684
        %v2686 = vpop.f32.mrb[0].mxu0
        %v2687 = vpop.f32.mrb[0].mxu0
        %v2688 = vpop.f32.mrb[0].mxu0
        %2689 = vdwg.mxu0
        %2690 = vmatprep.subr.bf16.mxu0 0
        %2691 = vmatpush1.bf16.msra.mxu0 %v2602
        %2692 = vmatprep.subr.bf16.mxu0 0
        %2693 = vmatpush1.bf16.msra.mxu0 %v2603
        %2694 = vmatprep.subr.bf16.mxu0 0
        %2695 = vmatpush1.bf16.msra.mxu0 %v2604
        %2696 = vmatprep.subr.bf16.mxu0 0
        %2697 = vmatpush1.bf16.msra.mxu0 %v2605
        %2698 = vmatprep.subr.bf16.mxu0 0
        %2699 = vmatpush1.bf16.msra.mxu0 %v2606
        %2700 = vmatprep.subr.bf16.mxu0 0
        %2701 = vmatpush1.bf16.msra.mxu0 %v2607
        %2702 = vmatprep.subr.bf16.mxu0 0
        %2703 = vmatpush1.bf16.msra.mxu0 %v2608
        %2704 = vmatprep.subr.bf16.mxu0 0
        %2705 = vmatpush1.bf16.msra.mxu0 %v2609
        %2706 = vmatprep.subr.bf16.mxu0 0
        %2707 = vmatpush1.bf16.msra.mxu0 %v2610
        %2708 = vmatprep.subr.bf16.mxu0 0
        %2709 = vmatpush1.bf16.msra.mxu0 %v2611
        %2710 = vmatprep.subr.bf16.mxu0 0
        %2711 = vmatpush1.bf16.msra.mxu0 %v2612
        %2712 = vmatprep.subr.bf16.mxu0 0
        %2713 = vmatpush1.bf16.msra.mxu0 %v2613
        %2714 = vmatprep.subr.bf16.mxu0 0
        %2715 = vmatpush1.bf16.msra.mxu0 %v2614
        %2716 = vmatprep.subr.bf16.mxu0 0
        %2717 = vmatpush1.bf16.msra.mxu0 %v2615
        %2718 = vmatprep.subr.bf16.mxu0 0
        %2719 = vmatpush1.bf16.msra.mxu0 %v2616
        %2720 = vmatprep.subr.bf16.mxu0 0
        %2721 = vmatpush1.bf16.msra.mxu0 %v2617
        %2722 = vmatprep.mubr.bf16.mxu0 %v2386
        %2723 = vmatmul.mubr.bf16.gmra.mrb[0].mxu0 %v2385
        %v2724 = vpop.f32.mrb[0].mxu0
        %v2725 = vadd.f32 %v2685, %v2724
        %v2726 = vpop.f32.mrb[0].mxu0
        %v2727 = vpop.f32.mrb[0].mxu0
        %v2728 = vpop.f32.mrb[0].mxu0
        %2729 = vdwg.mxu0
        %vm2730 = vcmask 1041408
        %v2731 = vsel %vm2730, %v2725, -inf
        %2732 = vmax.xlane.f32.xlu0 %v2731
        %v2733 = vpop.xlane.xlu0 %2732
        %v2734 = vsub.f32 %v2725, %v2733
        %v2735 = vmul.f32 %v2734, 1.442695
        %v2736 = vpow.pop %v2735
        %v2737 = vsel %vm2730, %v2736, 0.0
        %2738 = vadd.xlane.f32.xlu0 %v2737
        %v2739 = vpop.xlane.xlu0 %2738
        %v2740 = vlog2.pop %v2739
        %v2741 = vmul.f32 %v2740, 0.6931472
        %v2742 = vsub.f32 %v2734, %v2741
        %2743 = vst [vmem:[%s458] sm:$0x3] %v2742
        %s2744 = sand.u32 %s232, 1
        %s2745 = scalar_lea.sflag [#allocation4], %s2744
        %s2746 = sand.u32 %s232, 1
        %s2747 = smul.addr %s2746, 2
        %s2748 = scalar_lea.vmem [#allocation17], %s2747
        // Predicated region
        $region93: #{tpu_custom_call.1} parent=55 // pred_check
          %p2749 = pneg %p242
        $region94: #{tpu_custom_call.1} parent=55 // pred_check_branch
          %2751 = sbr.rel (%p2749) target = $region96
        $region95: #{tpu_custom_call.1} parent=55 // pred_region
          %s2753 = ssub.s32 32, 32
          %2754 = vsyncadd %s2745, %s2753
          %s2755 = smul.addr %s30, 32
          %s2756 = scalar_lea.hbm %s9, %s2755
          %s2758 = sshll.u32 %s2748, 4
          %s2759 = int_to_ptr.vmem [resolvable:$true] %s2758
          %2761 = dma.vmem_to_hbm [thread:$0]  %s2759, 32, %s2756, %s2745
        $region96: #{tpu_custom_call.1} parent=55 // pred_fallthru
          _
      $region56: #{tpu_custom_call.1} parent=5 // pred_fallthru
        _
      %p2762 = scmp.le.s32.totalorder 2, %s25
      // Predicated region
      $region97: #{tpu_custom_call.1} parent=5 // pred_check
        %p2763 = pneg %p2762
      $region98: #{tpu_custom_call.1} parent=5 // pred_check_branch
        %2765 = sbr.rel (%p2763) target = $region100
      $region99: #{tpu_custom_call.1} parent=5 // pred_region
        %s2766 = ssub.s32 %s25, 2
        // Predicated region
        $region101: #{tpu_custom_call.1} parent=99 // pred_check
          %p2767 = pneg %p248
        $region102: #{tpu_custom_call.1} parent=99 // pred_check_branch
          %2769 = sbr.rel (%p2767) target = $region104
        $region103: #{tpu_custom_call.1} parent=99 // pred_region
          %s2770 = sand.u32 %s233, 1
          %s2771 = scalar_lea.sflag [#allocation4], %s2770
          %s2772 = sand.u32 %s233, 1
          %s2773 = smul.addr %s2772, 2
          %s2774 = scalar_lea.vmem [#allocation17], %s2773
          %2775 = dma.done %s2771, 32
        $region104: #{tpu_custom_call.1} parent=99 // pred_fallthru
          _
      $region100: #{tpu_custom_call.1} parent=5 // pred_fallthru
        _
    $region6: #{tpu_custom_call.1} parent=1 // loop_footer
      %s29 = sadd.s32 1, %s25
    $region7: #{tpu_custom_call.1} parent=1 // loop_footer_branch
      %24 = sbr.rel target = $region3
    $region8: #{tpu_custom_call.1} parent=1 // loop_exit
      _
    %2776 = vsyncpa [#allocation3], 1
    %s2777 = scalar_lea.sflag [#allocation3], 1
    %2778 = vsyncpa %s2777, 1
    %2779 = vsyncpa [#allocation6], 1
    %2780 = vsyncpa [#allocation9], 1
    %2781 = vsyncpa [#allocation12], 1
    %2782 = vsyncpa [#allocation15], 1
    %2783 = vsyncpa [#allocation4], 1
    %s2784 = scalar_lea.sflag [#allocation4], 1
    %2785 = vsyncpa %s2784, 1

</llo_original>
